<compile_context>
chip_gen: v5e
topology: v5e:2x2
jax: 0.10.0
libtpu: 0.0.40
codegen_flags: <defaults>
</compile_context>

<pallas_src>
import functools

import jax
import jax.numpy as jnp
from jax.experimental import pallas as pl
from jax.experimental.pallas import tpu as pltpu

# Model dims (module defines embedding_dim=32, hidden_dim=64; vocab picked small).
VOCAB = 16
EMBED = 32
HIDDEN = 64

LANE = 128                 # vreg lane width
SUBLANE = 8                # vreg sublane height (= rows per batch shard)
H_PAD = LANE               # hidden padded to one full 128-lane block
G_PAD = 4 * H_PAD          # 512: four lane-aligned gate blocks (i | f | g | o)
V_PAD = LANE               # vocab padded to 128 (one-hot K dim and logit lanes)

_VMEM_SOFT_LIMIT = 24 << 20   # headroom under the 32 MiB default scoped-VMEM limit


def _pad_gate_cols(w):
    """(rows, 4*H) -> (rows, 4*H_PAD); gate k's real cols land at [k*H_PAD : k*H_PAD+H]."""
    rows = w.shape[0]
    w4 = w.reshape(rows, 4, HIDDEN)
    out = jnp.zeros((rows, 4, H_PAD), w.dtype).at[:, :, :HIDDEN].set(w4)
    return out.reshape(rows, G_PAD)


def pack_params(params):
    """One-time weight layout plumbing (runs once; reuse the result for every forward)."""
    emb = params["embedding"].astype(jnp.float32)
    w_ih, w_hh = params["w_ih"], params["w_hh"]
    b_ih, b_hh = params["b_ih"], params["b_hh"]
    w_fc, b_fc = params["w_fc"], params["b_fc"]
    hi = jax.lax.Precision.HIGHEST

    # Fold embedding into the input-gate table; pad each gate to 128 lanes, hidden rows to
    # 128, logits to 128.
    gx_tab = jnp.zeros((V_PAD, G_PAD), jnp.float32).at[:VOCAB, :].set(
        _pad_gate_cols(jnp.dot(emb, w_ih.T, precision=hi)))           # (V_PAD, G_PAD)
    bg = _pad_gate_cols((b_ih + b_hh).reshape(1, 4 * HIDDEN))         # (1, G_PAD)
    whh = jnp.zeros((H_PAD, G_PAD), jnp.float32).at[:HIDDEN, :].set(
        _pad_gate_cols(w_hh.T))                                       # (H_PAD, G_PAD)
    wfc = jnp.zeros((H_PAD, V_PAD), jnp.float32).at[:HIDDEN, :VOCAB].set(w_fc.T)
    bfc = jnp.zeros((1, V_PAD), jnp.float32).at[:, :VOCAB].set(b_fc.reshape(1, VOCAB))

    # Zero-padding invariants are load-bearing: padded gate columns/rows must stay exactly
    # 0 so padded lanes of c/h remain 0 and never leak into real lanes via h @ W_hh.
    for name, arr in (("gx_tab", gx_tab), ("bg", bg), ("whh", whh)):
        pad_cols = arr.reshape(arr.shape[0], 4, H_PAD)[:, :, HIDDEN:]
        assert bool(jnp.all(pad_cols == 0.0)), f"nonzero gate-column padding in {name}"
    assert bool(jnp.all(whh[HIDDEN:, :] == 0.0)), "nonzero padded rows in whh"
    assert bool(jnp.all(wfc[HIDDEN:, :] == 0.0)), "nonzero padded rows in wfc"
    assert bool(jnp.all(wfc[:, VOCAB:] == 0.0)), "nonzero padded cols in wfc"

    return {"gx_tab": gx_tab, "bg": bg, "whh": whh, "wfc": wfc, "bfc": bfc}


def lstm_fused_kernel(seq_len,
                      tok_ref, gxt_ref, bg_ref, whh_ref, wfc_ref, bfc_ref,
                      out_ref, gx_ref, hs_ref):
    # ---- fused embedding lookup + input projection: one batched MXU op, no recurrence ----
    tok = tok_ref[...]                                                # (T*8, 1) int32
    iota_v = jax.lax.broadcasted_iota(jnp.int32, (tok.shape[0], V_PAD), 1)
    onehot = (tok == iota_v).astype(jnp.float32)                      # (T*8, V_PAD)
    gx_ref[...] = (jnp.dot(onehot, gxt_ref[...],
                           preferred_element_type=jnp.float32)
                   + bg_ref[...])                                     # (T*8, G_PAD)

    # ---- serial LSTM recurrence over T; everything else is hoisted out of the loop ----
    def step(t, carry):
        h, c = carry                                                  # (8, H_PAD) each
        r0 = pl.multiple_of(t * SUBLANE, SUBLANE)
        gates = gx_ref[pl.ds(r0, SUBLANE), :] + jnp.dot(
            h, whh_ref[...], preferred_element_type=jnp.float32)      # (8, G_PAD)
        # 128-lane-aligned gate slices (pure vreg views, no cross-lane work).
        i = jax.nn.sigmoid(gates[:, 0 * H_PAD:1 * H_PAD])
        f = jax.nn.sigmoid(gates[:, 1 * H_PAD:2 * H_PAD])
        g = jnp.tanh(gates[:, 2 * H_PAD:3 * H_PAD])
        o = jax.nn.sigmoid(gates[:, 3 * H_PAD:4 * H_PAD])
        c_new = f * c + i * g                 # padded lanes: 0.5*0 + 0.5*0 = 0
        h_new = o * jnp.tanh(c_new)           # padded lanes: 0.5*tanh(0)   = 0
        hs_ref[pl.ds(r0, SUBLANE), :] = h_new
        return (h_new, c_new)

    init = (jnp.zeros((SUBLANE, H_PAD), jnp.float32),
            jnp.zeros((SUBLANE, H_PAD), jnp.float32))
    # Unroll capped at 8: the serial dep chain means deeper unroll buys nothing once loads
    # are hoisted, while full unroll at large T blows up code size / vreg pressure.
    jax.lax.fori_loop(0, seq_len, step, init, unroll=min(seq_len, 8))

    # ---- single batched FC projection + one lane-dense output store ----
    out_ref[...] = (jnp.dot(hs_ref[...], wfc_ref[...],
                            preferred_element_type=jnp.float32)
                    + bfc_ref[...])                                   # (T*8, V_PAD)


@jax.jit
def chatbot_forward(tokens, packed):
    """tokens: (T, B) int32 (seq-first, like nn.LSTM default). Returns (T, B, VOCAB) f32."""
    T, B = tokens.shape
    n_shards = pl.cdiv(B, SUBLANE)        # one 8-row batch shard per grid step
    BP = n_shards * SUBLANE
    TS = T * SUBLANE                      # rows per shard: time-major, 8 batch rows each

    # VMEM scaling guard: chunk the T axis instead of raising vmem_limit_bytes if the
    # per-shard working set outgrows the default scoped-VMEM budget (v7x: 64 MiB physical).
    per_shard_bytes = 4 * 2 * (TS * G_PAD + TS * H_PAD + TS * V_PAD
                               + V_PAD * G_PAD + H_PAD * G_PAD + H_PAD * V_PAD)
    assert per_shard_bytes < _VMEM_SOFT_LIMIT, (
        "T too large for the all-in-VMEM design; chunk the T axis instead")

    # Pad batch (sublane dim) to a multiple of 8; padded rows use token 0, discarded later.
    # Lay tokens out shard-major so each grid step sees its own (T*8, 1) column.
    # TODO(synk): at large T*B present tokens lane-dense instead of a 1-lane column.
    tok = jnp.zeros((T, BP), jnp.int32).at[:, :B].set(tokens)
    tok = tok.reshape(T, n_shards, SUBLANE).transpose(1, 0, 2).reshape(n_shards * TS, 1)

    grid_spec = pltpu.PrefetchScalarGridSpec(
        num_scalar_prefetch=0,
        grid=(n_shards,),                                   # independent batch shards
        in_specs=[
            pl.BlockSpec((TS, 1), lambda s: (s, 0)),              # tokens (per shard)
            pl.BlockSpec((V_PAD, G_PAD), lambda s: (0, 0)),       # emb @ W_ih^T table
            pl.BlockSpec((1, G_PAD), lambda s: (0, 0)),           # b_ih + b_hh (padded)
            pl.BlockSpec((H_PAD, G_PAD), lambda s: (0, 0)),       # W_hh^T (padded)
            pl.BlockSpec((H_PAD, V_PAD), lambda s: (0, 0)),       # W_fc^T (padded)
            pl.BlockSpec((1, V_PAD), lambda s: (0, 0)),           # b_fc (padded)
        ],
        out_specs=pl.BlockSpec((TS, V_PAD), lambda s: (s, 0)),
        scratch_shapes=[
            pltpu.VMEM((TS, G_PAD), jnp.float32),   # precomputed input-side gates
            pltpu.VMEM((TS, H_PAD), jnp.float32),   # all hidden states h_t
        ],
    )

    out = pl.pallas_call(
        functools.partial(lstm_fused_kernel, T),
        out_shape=jax.ShapeDtypeStruct((n_shards * TS, V_PAD), jnp.float32),
        grid_spec=grid_spec,
        compiler_params=pltpu.CompilerParams(
            dimension_semantics=("parallel",)),     # shards -> both TCs on v7x when BP > 8
    )(tok, packed["gx_tab"], packed["bg"], packed["whh"], packed["wfc"], packed["bfc"])

    out = out.reshape(n_shards, T, SUBLANE, V_PAD).transpose(1, 0, 2, 3)
    return out.reshape(T, BP, V_PAD)[:, :B, :VOCAB]


def reference_forward(tokens, params):
    """Pure-JAX reference matching PyTorch LSTM semantics (single layer, zero init state)."""
    emb, w_ih, w_hh, b_ih, b_hh, w_fc, b_fc = (
        params["embedding"], params["w_ih"], params["w_hh"],
        params["b_ih"], params["b_hh"], params["w_fc"], params["b_fc"])
    H = HIDDEN
    hi = jax.lax.Precision.HIGHEST
    x_emb = jnp.take(emb, tokens, axis=0)            # (T, B, E)
    B = tokens.shape[1]
    h = jnp.zeros((B, H), jnp.float32)
    c = jnp.zeros((B, H), jnp.float32)

    def step(carry, x_t):
        h, c = carry
        gates = (jnp.dot(x_t, w_ih.T, precision=hi) + b_ih
                 + jnp.dot(h, w_hh.T, precision=hi) + b_hh)
        i = jax.nn.sigmoid(gates[:, 0 * H:1 * H])
        f = jax.nn.sigmoid(gates[:, 1 * H:2 * H])
        g = jnp.tanh(gates[:, 2 * H:3 * H])
        o = jax.nn.sigmoid(gates[:, 3 * H:4 * H])
        c = f * c + i * g
        h = o * jnp.tanh(c)
        return (h, c), h

    (_, _), hs = jax.lax.scan(step, (h, c), x_emb)   # hs: (T, B, H)
    return jnp.dot(hs, w_fc.T, precision=hi) + b_fc


def init_params(key):
    ks = jax.random.split(key, 7)
    s = 0.1
    return {
        "embedding": s * jax.random.normal(ks[0], (VOCAB, EMBED), jnp.float32),
        "w_ih": s * jax.random.normal(ks[1], (4 * HIDDEN, EMBED), jnp.float32),
        "w_hh": s * jax.random.normal(ks[2], (4 * HIDDEN, HIDDEN), jnp.float32),
        "b_ih": s * jax.random.normal(ks[3], (4 * HIDDEN,), jnp.float32),
        "b_hh": s * jax.random.normal(ks[4], (4 * HIDDEN,), jnp.float32),
        "w_fc": s * jax.random.normal(ks[5], (VOCAB, HIDDEN), jnp.float32),
        "b_fc": s * jax.random.normal(ks[6], (VOCAB,), jnp.float32),
    }


if __name__ == "__main__":
    key = jax.random.PRNGKey(0)
    k_params, k_tokens = jax.random.split(key)
    params = init_params(k_params)

    # One-time weight packing, cached outside the jitted per-call forward.
    packed = pack_params(params)

    T, B = 8, 2
    tokens = jax.random.randint(k_tokens, (T, B), 0, VOCAB, dtype=jnp.int32)

    logits = jax.block_until_ready(chatbot_forward(tokens, packed))
    ref = jax.block_until_ready(reference_forward(tokens, params))

    assert logits.shape == (T, B, VOCAB)
    assert jnp.allclose(logits, ref, atol=5e-4, rtol=5e-4), "mismatch vs reference"

    print("KERNEL_OK")
</pallas_src>

<mosaic_0001>
module attributes {stable_mosaic.version = 11 : i64} {
  func.func @lstm_fused_kernel(%arg0: i32, %arg1: memref<64x1xi32, #tpu.memory_space<vmem>>, %arg2: memref<128x512xf32, #tpu.memory_space<vmem>>, %arg3: memref<1x512xf32, #tpu.memory_space<vmem>>, %arg4: memref<128x512xf32, #tpu.memory_space<vmem>>, %arg5: memref<128x128xf32, #tpu.memory_space<vmem>>, %arg6: memref<1x128xf32, #tpu.memory_space<vmem>>, %arg7: memref<64x128xf32, #tpu.memory_space<vmem>>, %arg8: memref<64x512xf32, #tpu.memory_space<vmem>>, %arg9: memref<64x128xf32, #tpu.memory_space<vmem>>) attributes {dimension_semantics = [#tpu.dimension_semantics<parallel>], iteration_bounds = array<i64: 1>, scalar_prefetch = 0 : i64, scratch_operands = 2 : i64, tpu.core_type = #tpu.core_type<tc>, window_params = [{transform_indices = @transform_0, window_bounds = array<i64: 64, 1>}, {pipeline_mode = #tpu.pipeline_mode<synchronous>, transform_indices = @transform_1, window_bounds = array<i64: 128, 512>}, {pipeline_mode = #tpu.pipeline_mode<synchronous>, transform_indices = @transform_2, window_bounds = array<i64: 1, 512>}, {pipeline_mode = #tpu.pipeline_mode<synchronous>, transform_indices = @transform_3, window_bounds = array<i64: 128, 512>}, {pipeline_mode = #tpu.pipeline_mode<synchronous>, transform_indices = @transform_4, window_bounds = array<i64: 128, 128>}, {pipeline_mode = #tpu.pipeline_mode<synchronous>, transform_indices = @transform_5, window_bounds = array<i64: 1, 128>}, {transform_indices = @transform_6, window_bounds = array<i64: 64, 128>}]} {
    %c0 = arith.constant 0 : index
    %c0_0 = arith.constant 0 : index
    %0 = vector.load %arg1[%c0, %c0_0] : memref<64x1xi32, #tpu.memory_space<vmem>>, vector<64x1xi32>
    %1 = tpu.iota {dimensions = array<i32: 1>} : vector<64x128xi32>
    %2 = vector.broadcast %0 : vector<64x1xi32> to vector<64x128xi32>
    %3 = arith.cmpi eq, %2, %1 : vector<64x128xi32>
    %4 = arith.extui %3 : vector<64x128xi1> to vector<64x128xi32>
    %5 = arith.sitofp %4 : vector<64x128xi32> to vector<64x128xf32>
    %c0_1 = arith.constant 0 : index
    %c0_2 = arith.constant 0 : index
    %6 = vector.load %arg2[%c0_1, %c0_2] : memref<128x512xf32, #tpu.memory_space<vmem>>, vector<128x512xf32>
    %cst = arith.constant dense<0.000000e+00> : vector<64x512xf32>
    %7 = tpu.matmul %5, %6, %cst {dimension_numbers = #tpu.dot_dimension_numbers<[1], [0], [0], [1], [0, 0, 1, 1], [], []>} : vector<64x128xf32>, vector<128x512xf32>, vector<64x512xf32> -> vector<64x512xf32>
    %c0_3 = arith.constant 0 : index
    %c0_4 = arith.constant 0 : index
    %8 = vector.load %arg3[%c0_3, %c0_4] : memref<1x512xf32, #tpu.memory_space<vmem>>, vector<1x512xf32>
    %9 = vector.broadcast %8 : vector<1x512xf32> to vector<64x512xf32>
    %10 = arith.addf %7, %9 : vector<64x512xf32>
    %c0_5 = arith.constant 0 : index
    %c0_6 = arith.constant 0 : index
    %11 = vector.load %arg8[%c0_5, %c0_6] : memref<64x512xf32, #tpu.memory_space<vmem>>, vector<64x512xf32>
    tpu.vector_store %arg8[%c0_5, %c0_6], %10 {strides = array<i32>} : memref<64x512xf32, #tpu.memory_space<vmem>>, vector<64x512xf32>,
    %cst_7 = arith.constant 0.000000e+00 : f32
    %12 = vector.broadcast %cst_7 : f32 to vector<8x128xf32>
    %cst_8 = arith.constant 0.000000e+00 : f32
    %13 = vector.broadcast %cst_8 : f32 to vector<8x128xf32>
    %c0_i32 = arith.constant 0 : i32
    %c8_i32 = arith.constant 8 : i32
    %14 = arith.muli %c0_i32, %c8_i32 : i32
    %15 = tpu.assume_multiple %14, 8 : i32
    %16 = arith.index_cast %15 : i32 to index
    %c0_9 = arith.constant 0 : index
    %17 = vector.load %arg8[%16, %c0_9] : memref<64x512xf32, #tpu.memory_space<vmem>>, vector<8x512xf32>
    %c0_10 = arith.constant 0 : index
    %c0_11 = arith.constant 0 : index
    %18 = vector.load %arg4[%c0_10, %c0_11] : memref<128x512xf32, #tpu.memory_space<vmem>>, vector<128x512xf32>
    %cst_12 = arith.constant dense<0.000000e+00> : vector<8x512xf32>
    %19 = tpu.matmul %12, %18, %cst_12 {dimension_numbers = #tpu.dot_dimension_numbers<[1], [0], [0], [1], [0, 0, 1, 1], [], []>} : vector<8x128xf32>, vector<128x512xf32>, vector<8x512xf32> -> vector<8x512xf32>
    %20 = arith.addf %17, %19 : vector<8x512xf32>
    %21 = vector.extract_strided_slice %20 {offsets = [0, 0], sizes = [8, 128], strides = [1, 1]} : vector<8x512xf32> to vector<8x128xf32>
    %22 = arith.negf %21 : vector<8x128xf32>
    %23 = math.exp %22 : vector<8x128xf32>
    %cst_13 = arith.constant 1.000000e+00 : f32
    %24 = vector.broadcast %cst_13 : f32 to vector<8x128xf32>
    %25 = arith.addf %24, %23 : vector<8x128xf32>
    %26 = arith.divf %24, %25 : vector<8x128xf32>
    %27 = vector.extract_strided_slice %20 {offsets = [0, 128], sizes = [8, 128], strides = [1, 1]} : vector<8x512xf32> to vector<8x128xf32>
    %28 = arith.negf %27 : vector<8x128xf32>
    %29 = math.exp %28 : vector<8x128xf32>
    %cst_14 = arith.constant 1.000000e+00 : f32
    %30 = vector.broadcast %cst_14 : f32 to vector<8x128xf32>
    %31 = arith.addf %30, %29 : vector<8x128xf32>
    %32 = arith.divf %30, %31 : vector<8x128xf32>
    %33 = vector.extract_strided_slice %20 {offsets = [0, 256], sizes = [8, 128], strides = [1, 1]} : vector<8x512xf32> to vector<8x128xf32>
    %34 = math.tanh %33 : vector<8x128xf32>
    %35 = vector.extract_strided_slice %20 {offsets = [0, 384], sizes = [8, 128], strides = [1, 1]} : vector<8x512xf32> to vector<8x128xf32>
    %36 = arith.negf %35 : vector<8x128xf32>
    %37 = math.exp %36 : vector<8x128xf32>
    %cst_15 = arith.constant 1.000000e+00 : f32
    %38 = vector.broadcast %cst_15 : f32 to vector<8x128xf32>
    %39 = arith.addf %38, %37 : vector<8x128xf32>
    %40 = arith.divf %38, %39 : vector<8x128xf32>
    %41 = arith.mulf %32, %13 : vector<8x128xf32>
    %42 = arith.mulf %26, %34 : vector<8x128xf32>
    %43 = arith.addf %41, %42 : vector<8x128xf32>
    %44 = math.tanh %43 : vector<8x128xf32>
    %45 = arith.mulf %40, %44 : vector<8x128xf32>
    %46 = arith.index_cast %15 : i32 to index
    %c0_16 = arith.constant 0 : index
    %47 = vector.load %arg9[%46, %c0_16] : memref<64x128xf32, #tpu.memory_space<vmem>>, vector<8x128xf32>
    tpu.vector_store %arg9[%46, %c0_16], %45 {strides = array<i32>} : memref<64x128xf32, #tpu.memory_space<vmem>>, vector<8x128xf32>,
    %c1_i32 = arith.constant 1 : i32
    %c8_i32_17 = arith.constant 8 : i32
    %48 = arith.muli %c1_i32, %c8_i32_17 : i32
    %49 = tpu.assume_multiple %48, 8 : i32
    %50 = arith.index_cast %49 : i32 to index
    %c0_18 = arith.constant 0 : index
    %51 = vector.load %arg8[%50, %c0_18] : memref<64x512xf32, #tpu.memory_space<vmem>>, vector<8x512xf32>
    %c0_19 = arith.constant 0 : index
    %c0_20 = arith.constant 0 : index
    %52 = vector.load %arg4[%c0_19, %c0_20] : memref<128x512xf32, #tpu.memory_space<vmem>>, vector<128x512xf32>
    %cst_21 = arith.constant dense<0.000000e+00> : vector<8x512xf32>
    %53 = tpu.matmul %45, %52, %cst_21 {dimension_numbers = #tpu.dot_dimension_numbers<[1], [0], [0], [1], [0, 0, 1, 1], [], []>} : vector<8x128xf32>, vector<128x512xf32>, vector<8x512xf32> -> vector<8x512xf32>
    %54 = arith.addf %51, %53 : vector<8x512xf32>
    %55 = vector.extract_strided_slice %54 {offsets = [0, 0], sizes = [8, 128], strides = [1, 1]} : vector<8x512xf32> to vector<8x128xf32>
    %56 = arith.negf %55 : vector<8x128xf32>
    %57 = math.exp %56 : vector<8x128xf32>
    %cst_22 = arith.constant 1.000000e+00 : f32
    %58 = vector.broadcast %cst_22 : f32 to vector<8x128xf32>
    %59 = arith.addf %58, %57 : vector<8x128xf32>
    %60 = arith.divf %58, %59 : vector<8x128xf32>
    %61 = vector.extract_strided_slice %54 {offsets = [0, 128], sizes = [8, 128], strides = [1, 1]} : vector<8x512xf32> to vector<8x128xf32>
    %62 = arith.negf %61 : vector<8x128xf32>
    %63 = math.exp %62 : vector<8x128xf32>
    %cst_23 = arith.constant 1.000000e+00 : f32
    %64 = vector.broadcast %cst_23 : f32 to vector<8x128xf32>
    %65 = arith.addf %64, %63 : vector<8x128xf32>
    %66 = arith.divf %64, %65 : vector<8x128xf32>
    %67 = vector.extract_strided_slice %54 {offsets = [0, 256], sizes = [8, 128], strides = [1, 1]} : vector<8x512xf32> to vector<8x128xf32>
    %68 = math.tanh %67 : vector<8x128xf32>
    %69 = vector.extract_strided_slice %54 {offsets = [0, 384], sizes = [8, 128], strides = [1, 1]} : vector<8x512xf32> to vector<8x128xf32>
    %70 = arith.negf %69 : vector<8x128xf32>
    %71 = math.exp %70 : vector<8x128xf32>
    %cst_24 = arith.constant 1.000000e+00 : f32
    %72 = vector.broadcast %cst_24 : f32 to vector<8x128xf32>
    %73 = arith.addf %72, %71 : vector<8x128xf32>
    %74 = arith.divf %72, %73 : vector<8x128xf32>
    %75 = arith.mulf %66, %43 : vector<8x128xf32>
    %76 = arith.mulf %60, %68 : vector<8x128xf32>
    %77 = arith.addf %75, %76 : vector<8x128xf32>
    %78 = math.tanh %77 : vector<8x128xf32>
    %79 = arith.mulf %74, %78 : vector<8x128xf32>
    %80 = arith.index_cast %49 : i32 to index
    %c0_25 = arith.constant 0 : index
    %81 = vector.load %arg9[%80, %c0_25] : memref<64x128xf32, #tpu.memory_space<vmem>>, vector<8x128xf32>
    tpu.vector_store %arg9[%80, %c0_25], %79 {strides = array<i32>} : memref<64x128xf32, #tpu.memory_space<vmem>>, vector<8x128xf32>,
    %c2_i32 = arith.constant 2 : i32
    %c8_i32_26 = arith.constant 8 : i32
    %82 = arith.muli %c2_i32, %c8_i32_26 : i32
    %83 = tpu.assume_multiple %82, 8 : i32
    %84 = arith.index_cast %83 : i32 to index
    %c0_27 = arith.constant 0 : index
    %85 = vector.load %arg8[%84, %c0_27] : memref<64x512xf32, #tpu.memory_space<vmem>>, vector<8x512xf32>
    %c0_28 = arith.constant 0 : index
    %c0_29 = arith.constant 0 : index
    %86 = vector.load %arg4[%c0_28, %c0_29] : memref<128x512xf32, #tpu.memory_space<vmem>>, vector<128x512xf32>
    %cst_30 = arith.constant dense<0.000000e+00> : vector<8x512xf32>
    %87 = tpu.matmul %79, %86, %cst_30 {dimension_numbers = #tpu.dot_dimension_numbers<[1], [0], [0], [1], [0, 0, 1, 1], [], []>} : vector<8x128xf32>, vector<128x512xf32>, vector<8x512xf32> -> vector<8x512xf32>
    %88 = arith.addf %85, %87 : vector<8x512xf32>
    %89 = vector.extract_strided_slice %88 {offsets = [0, 0], sizes = [8, 128], strides = [1, 1]} : vector<8x512xf32> to vector<8x128xf32>
    %90 = arith.negf %89 : vector<8x128xf32>
    %91 = math.exp %90 : vector<8x128xf32>
    %cst_31 = arith.constant 1.000000e+00 : f32
    %92 = vector.broadcast %cst_31 : f32 to vector<8x128xf32>
    %93 = arith.addf %92, %91 : vector<8x128xf32>
    %94 = arith.divf %92, %93 : vector<8x128xf32>
    %95 = vector.extract_strided_slice %88 {offsets = [0, 128], sizes = [8, 128], strides = [1, 1]} : vector<8x512xf32> to vector<8x128xf32>
    %96 = arith.negf %95 : vector<8x128xf32>
    %97 = math.exp %96 : vector<8x128xf32>
    %cst_32 = arith.constant 1.000000e+00 : f32
    %98 = vector.broadcast %cst_32 : f32 to vector<8x128xf32>
    %99 = arith.addf %98, %97 : vector<8x128xf32>
    %100 = arith.divf %98, %99 : vector<8x128xf32>
    %101 = vector.extract_strided_slice %88 {offsets = [0, 256], sizes = [8, 128], strides = [1, 1]} : vector<8x512xf32> to vector<8x128xf32>
    %102 = math.tanh %101 : vector<8x128xf32>
    %103 = vector.extract_strided_slice %88 {offsets = [0, 384], sizes = [8, 128], strides = [1, 1]} : vector<8x512xf32> to vector<8x128xf32>
    %104 = arith.negf %103 : vector<8x128xf32>
    %105 = math.exp %104 : vector<8x128xf32>
    %cst_33 = arith.constant 1.000000e+00 : f32
    %106 = vector.broadcast %cst_33 : f32 to vector<8x128xf32>
    %107 = arith.addf %106, %105 : vector<8x128xf32>
    %108 = arith.divf %106, %107 : vector<8x128xf32>
    %109 = arith.mulf %100, %77 : vector<8x128xf32>
    %110 = arith.mulf %94, %102 : vector<8x128xf32>
    %111 = arith.addf %109, %110 : vector<8x128xf32>
    %112 = math.tanh %111 : vector<8x128xf32>
    %113 = arith.mulf %108, %112 : vector<8x128xf32>
    %114 = arith.index_cast %83 : i32 to index
    %c0_34 = arith.constant 0 : index
    %115 = vector.load %arg9[%114, %c0_34] : memref<64x128xf32, #tpu.memory_space<vmem>>, vector<8x128xf32>
    tpu.vector_store %arg9[%114, %c0_34], %113 {strides = array<i32>} : memref<64x128xf32, #tpu.memory_space<vmem>>, vector<8x128xf32>,
    %c3_i32 = arith.constant 3 : i32
    %c8_i32_35 = arith.constant 8 : i32
    %116 = arith.muli %c3_i32, %c8_i32_35 : i32
    %117 = tpu.assume_multiple %116, 8 : i32
    %118 = arith.index_cast %117 : i32 to index
    %c0_36 = arith.constant 0 : index
    %119 = vector.load %arg8[%118, %c0_36] : memref<64x512xf32, #tpu.memory_space<vmem>>, vector<8x512xf32>
    %c0_37 = arith.constant 0 : index
    %c0_38 = arith.constant 0 : index
    %120 = vector.load %arg4[%c0_37, %c0_38] : memref<128x512xf32, #tpu.memory_space<vmem>>, vector<128x512xf32>
    %cst_39 = arith.constant dense<0.000000e+00> : vector<8x512xf32>
    %121 = tpu.matmul %113, %120, %cst_39 {dimension_numbers = #tpu.dot_dimension_numbers<[1], [0], [0], [1], [0, 0, 1, 1], [], []>} : vector<8x128xf32>, vector<128x512xf32>, vector<8x512xf32> -> vector<8x512xf32>
    %122 = arith.addf %119, %121 : vector<8x512xf32>
    %123 = vector.extract_strided_slice %122 {offsets = [0, 0], sizes = [8, 128], strides = [1, 1]} : vector<8x512xf32> to vector<8x128xf32>
    %124 = arith.negf %123 : vector<8x128xf32>
    %125 = math.exp %124 : vector<8x128xf32>
    %cst_40 = arith.constant 1.000000e+00 : f32
    %126 = vector.broadcast %cst_40 : f32 to vector<8x128xf32>
    %127 = arith.addf %126, %125 : vector<8x128xf32>
    %128 = arith.divf %126, %127 : vector<8x128xf32>
    %129 = vector.extract_strided_slice %122 {offsets = [0, 128], sizes = [8, 128], strides = [1, 1]} : vector<8x512xf32> to vector<8x128xf32>
    %130 = arith.negf %129 : vector<8x128xf32>
    %131 = math.exp %130 : vector<8x128xf32>
    %cst_41 = arith.constant 1.000000e+00 : f32
    %132 = vector.broadcast %cst_41 : f32 to vector<8x128xf32>
    %133 = arith.addf %132, %131 : vector<8x128xf32>
    %134 = arith.divf %132, %133 : vector<8x128xf32>
    %135 = vector.extract_strided_slice %122 {offsets = [0, 256], sizes = [8, 128], strides = [1, 1]} : vector<8x512xf32> to vector<8x128xf32>
    %136 = math.tanh %135 : vector<8x128xf32>
    %137 = vector.extract_strided_slice %122 {offsets = [0, 384], sizes = [8, 128], strides = [1, 1]} : vector<8x512xf32> to vector<8x128xf32>
    %138 = arith.negf %137 : vector<8x128xf32>
    %139 = math.exp %138 : vector<8x128xf32>
    %cst_42 = arith.constant 1.000000e+00 : f32
    %140 = vector.broadcast %cst_42 : f32 to vector<8x128xf32>
    %141 = arith.addf %140, %139 : vector<8x128xf32>
    %142 = arith.divf %140, %141 : vector<8x128xf32>
    %143 = arith.mulf %134, %111 : vector<8x128xf32>
    %144 = arith.mulf %128, %136 : vector<8x128xf32>
    %145 = arith.addf %143, %144 : vector<8x128xf32>
    %146 = math.tanh %145 : vector<8x128xf32>
    %147 = arith.mulf %142, %146 : vector<8x128xf32>
    %148 = arith.index_cast %117 : i32 to index
    %c0_43 = arith.constant 0 : index
    %149 = vector.load %arg9[%148, %c0_43] : memref<64x128xf32, #tpu.memory_space<vmem>>, vector<8x128xf32>
    tpu.vector_store %arg9[%148, %c0_43], %147 {strides = array<i32>} : memref<64x128xf32, #tpu.memory_space<vmem>>, vector<8x128xf32>,
    %c4_i32 = arith.constant 4 : i32
    %c8_i32_44 = arith.constant 8 : i32
    %150 = arith.muli %c4_i32, %c8_i32_44 : i32
    %151 = tpu.assume_multiple %150, 8 : i32
    %152 = arith.index_cast %151 : i32 to index
    %c0_45 = arith.constant 0 : index
    %153 = vector.load %arg8[%152, %c0_45] : memref<64x512xf32, #tpu.memory_space<vmem>>, vector<8x512xf32>
    %c0_46 = arith.constant 0 : index
    %c0_47 = arith.constant 0 : index
    %154 = vector.load %arg4[%c0_46, %c0_47] : memref<128x512xf32, #tpu.memory_space<vmem>>, vector<128x512xf32>
    %cst_48 = arith.constant dense<0.000000e+00> : vector<8x512xf32>
    %155 = tpu.matmul %147, %154, %cst_48 {dimension_numbers = #tpu.dot_dimension_numbers<[1], [0], [0], [1], [0, 0, 1, 1], [], []>} : vector<8x128xf32>, vector<128x512xf32>, vector<8x512xf32> -> vector<8x512xf32>
    %156 = arith.addf %153, %155 : vector<8x512xf32>
    %157 = vector.extract_strided_slice %156 {offsets = [0, 0], sizes = [8, 128], strides = [1, 1]} : vector<8x512xf32> to vector<8x128xf32>
    %158 = arith.negf %157 : vector<8x128xf32>
    %159 = math.exp %158 : vector<8x128xf32>
    %cst_49 = arith.constant 1.000000e+00 : f32
    %160 = vector.broadcast %cst_49 : f32 to vector<8x128xf32>
    %161 = arith.addf %160, %159 : vector<8x128xf32>
    %162 = arith.divf %160, %161 : vector<8x128xf32>
    %163 = vector.extract_strided_slice %156 {offsets = [0, 128], sizes = [8, 128], strides = [1, 1]} : vector<8x512xf32> to vector<8x128xf32>
    %164 = arith.negf %163 : vector<8x128xf32>
    %165 = math.exp %164 : vector<8x128xf32>
    %cst_50 = arith.constant 1.000000e+00 : f32
    %166 = vector.broadcast %cst_50 : f32 to vector<8x128xf32>
    %167 = arith.addf %166, %165 : vector<8x128xf32>
    %168 = arith.divf %166, %167 : vector<8x128xf32>
    %169 = vector.extract_strided_slice %156 {offsets = [0, 256], sizes = [8, 128], strides = [1, 1]} : vector<8x512xf32> to vector<8x128xf32>
    %170 = math.tanh %169 : vector<8x128xf32>
    %171 = vector.extract_strided_slice %156 {offsets = [0, 384], sizes = [8, 128], strides = [1, 1]} : vector<8x512xf32> to vector<8x128xf32>
    %172 = arith.negf %171 : vector<8x128xf32>
    %173 = math.exp %172 : vector<8x128xf32>
    %cst_51 = arith.constant 1.000000e+00 : f32
    %174 = vector.broadcast %cst_51 : f32 to vector<8x128xf32>
    %175 = arith.addf %174, %173 : vector<8x128xf32>
    %176 = arith.divf %174, %175 : vector<8x128xf32>
    %177 = arith.mulf %168, %145 : vector<8x128xf32>
    %178 = arith.mulf %162, %170 : vector<8x128xf32>
    %179 = arith.addf %177, %178 : vector<8x128xf32>
    %180 = math.tanh %179 : vector<8x128xf32>
    %181 = arith.mulf %176, %180 : vector<8x128xf32>
    %182 = arith.index_cast %151 : i32 to index
    %c0_52 = arith.constant 0 : index
    %183 = vector.load %arg9[%182, %c0_52] : memref<64x128xf32, #tpu.memory_space<vmem>>, vector<8x128xf32>
    tpu.vector_store %arg9[%182, %c0_52], %181 {strides = array<i32>} : memref<64x128xf32, #tpu.memory_space<vmem>>, vector<8x128xf32>,
    %c5_i32 = arith.constant 5 : i32
    %c8_i32_53 = arith.constant 8 : i32
    %184 = arith.muli %c5_i32, %c8_i32_53 : i32
    %185 = tpu.assume_multiple %184, 8 : i32
    %186 = arith.index_cast %185 : i32 to index
    %c0_54 = arith.constant 0 : index
    %187 = vector.load %arg8[%186, %c0_54] : memref<64x512xf32, #tpu.memory_space<vmem>>, vector<8x512xf32>
    %c0_55 = arith.constant 0 : index
    %c0_56 = arith.constant 0 : index
    %188 = vector.load %arg4[%c0_55, %c0_56] : memref<128x512xf32, #tpu.memory_space<vmem>>, vector<128x512xf32>
    %cst_57 = arith.constant dense<0.000000e+00> : vector<8x512xf32>
    %189 = tpu.matmul %181, %188, %cst_57 {dimension_numbers = #tpu.dot_dimension_numbers<[1], [0], [0], [1], [0, 0, 1, 1], [], []>} : vector<8x128xf32>, vector<128x512xf32>, vector<8x512xf32> -> vector<8x512xf32>
    %190 = arith.addf %187, %189 : vector<8x512xf32>
    %191 = vector.extract_strided_slice %190 {offsets = [0, 0], sizes = [8, 128], strides = [1, 1]} : vector<8x512xf32> to vector<8x128xf32>
    %192 = arith.negf %191 : vector<8x128xf32>
    %193 = math.exp %192 : vector<8x128xf32>
    %cst_58 = arith.constant 1.000000e+00 : f32
    %194 = vector.broadcast %cst_58 : f32 to vector<8x128xf32>
    %195 = arith.addf %194, %193 : vector<8x128xf32>
    %196 = arith.divf %194, %195 : vector<8x128xf32>
    %197 = vector.extract_strided_slice %190 {offsets = [0, 128], sizes = [8, 128], strides = [1, 1]} : vector<8x512xf32> to vector<8x128xf32>
    %198 = arith.negf %197 : vector<8x128xf32>
    %199 = math.exp %198 : vector<8x128xf32>
    %cst_59 = arith.constant 1.000000e+00 : f32
    %200 = vector.broadcast %cst_59 : f32 to vector<8x128xf32>
    %201 = arith.addf %200, %199 : vector<8x128xf32>
    %202 = arith.divf %200, %201 : vector<8x128xf32>
    %203 = vector.extract_strided_slice %190 {offsets = [0, 256], sizes = [8, 128], strides = [1, 1]} : vector<8x512xf32> to vector<8x128xf32>
    %204 = math.tanh %203 : vector<8x128xf32>
    %205 = vector.extract_strided_slice %190 {offsets = [0, 384], sizes = [8, 128], strides = [1, 1]} : vector<8x512xf32> to vector<8x128xf32>
    %206 = arith.negf %205 : vector<8x128xf32>
    %207 = math.exp %206 : vector<8x128xf32>
    %cst_60 = arith.constant 1.000000e+00 : f32
    %208 = vector.broadcast %cst_60 : f32 to vector<8x128xf32>
    %209 = arith.addf %208, %207 : vector<8x128xf32>
    %210 = arith.divf %208, %209 : vector<8x128xf32>
    %211 = arith.mulf %202, %179 : vector<8x128xf32>
    %212 = arith.mulf %196, %204 : vector<8x128xf32>
    %213 = arith.addf %211, %212 : vector<8x128xf32>
    %214 = math.tanh %213 : vector<8x128xf32>
    %215 = arith.mulf %210, %214 : vector<8x128xf32>
    %216 = arith.index_cast %185 : i32 to index
    %c0_61 = arith.constant 0 : index
    %217 = vector.load %arg9[%216, %c0_61] : memref<64x128xf32, #tpu.memory_space<vmem>>, vector<8x128xf32>
    tpu.vector_store %arg9[%216, %c0_61], %215 {strides = array<i32>} : memref<64x128xf32, #tpu.memory_space<vmem>>, vector<8x128xf32>,
    %c6_i32 = arith.constant 6 : i32
    %c8_i32_62 = arith.constant 8 : i32
    %218 = arith.muli %c6_i32, %c8_i32_62 : i32
    %219 = tpu.assume_multiple %218, 8 : i32
    %220 = arith.index_cast %219 : i32 to index
    %c0_63 = arith.constant 0 : index
    %221 = vector.load %arg8[%220, %c0_63] : memref<64x512xf32, #tpu.memory_space<vmem>>, vector<8x512xf32>
    %c0_64 = arith.constant 0 : index
    %c0_65 = arith.constant 0 : index
    %222 = vector.load %arg4[%c0_64, %c0_65] : memref<128x512xf32, #tpu.memory_space<vmem>>, vector<128x512xf32>
    %cst_66 = arith.constant dense<0.000000e+00> : vector<8x512xf32>
    %223 = tpu.matmul %215, %222, %cst_66 {dimension_numbers = #tpu.dot_dimension_numbers<[1], [0], [0], [1], [0, 0, 1, 1], [], []>} : vector<8x128xf32>, vector<128x512xf32>, vector<8x512xf32> -> vector<8x512xf32>
    %224 = arith.addf %221, %223 : vector<8x512xf32>
    %225 = vector.extract_strided_slice %224 {offsets = [0, 0], sizes = [8, 128], strides = [1, 1]} : vector<8x512xf32> to vector<8x128xf32>
    %226 = arith.negf %225 : vector<8x128xf32>
    %227 = math.exp %226 : vector<8x128xf32>
    %cst_67 = arith.constant 1.000000e+00 : f32
    %228 = vector.broadcast %cst_67 : f32 to vector<8x128xf32>
    %229 = arith.addf %228, %227 : vector<8x128xf32>
    %230 = arith.divf %228, %229 : vector<8x128xf32>
    %231 = vector.extract_strided_slice %224 {offsets = [0, 128], sizes = [8, 128], strides = [1, 1]} : vector<8x512xf32> to vector<8x128xf32>
    %232 = arith.negf %231 : vector<8x128xf32>
    %233 = math.exp %232 : vector<8x128xf32>
    %cst_68 = arith.constant 1.000000e+00 : f32
    %234 = vector.broadcast %cst_68 : f32 to vector<8x128xf32>
    %235 = arith.addf %234, %233 : vector<8x128xf32>
    %236 = arith.divf %234, %235 : vector<8x128xf32>
    %237 = vector.extract_strided_slice %224 {offsets = [0, 256], sizes = [8, 128], strides = [1, 1]} : vector<8x512xf32> to vector<8x128xf32>
    %238 = math.tanh %237 : vector<8x128xf32>
    %239 = vector.extract_strided_slice %224 {offsets = [0, 384], sizes = [8, 128], strides = [1, 1]} : vector<8x512xf32> to vector<8x128xf32>
    %240 = arith.negf %239 : vector<8x128xf32>
    %241 = math.exp %240 : vector<8x128xf32>
    %cst_69 = arith.constant 1.000000e+00 : f32
    %242 = vector.broadcast %cst_69 : f32 to vector<8x128xf32>
    %243 = arith.addf %242, %241 : vector<8x128xf32>
    %244 = arith.divf %242, %243 : vector<8x128xf32>
    %245 = arith.mulf %236, %213 : vector<8x128xf32>
    %246 = arith.mulf %230, %238 : vector<8x128xf32>
    %247 = arith.addf %245, %246 : vector<8x128xf32>
    %248 = math.tanh %247 : vector<8x128xf32>
    %249 = arith.mulf %244, %248 : vector<8x128xf32>
    %250 = arith.index_cast %219 : i32 to index
    %c0_70 = arith.constant 0 : index
    %251 = vector.load %arg9[%250, %c0_70] : memref<64x128xf32, #tpu.memory_space<vmem>>, vector<8x128xf32>
    tpu.vector_store %arg9[%250, %c0_70], %249 {strides = array<i32>} : memref<64x128xf32, #tpu.memory_space<vmem>>, vector<8x128xf32>,
    %c7_i32 = arith.constant 7 : i32
    %c8_i32_71 = arith.constant 8 : i32
    %252 = arith.muli %c7_i32, %c8_i32_71 : i32
    %253 = tpu.assume_multiple %252, 8 : i32
    %254 = arith.index_cast %253 : i32 to index
    %c0_72 = arith.constant 0 : index
    %255 = vector.load %arg8[%254, %c0_72] : memref<64x512xf32, #tpu.memory_space<vmem>>, vector<8x512xf32>
    %c0_73 = arith.constant 0 : index
    %c0_74 = arith.constant 0 : index
    %256 = vector.load %arg4[%c0_73, %c0_74] : memref<128x512xf32, #tpu.memory_space<vmem>>, vector<128x512xf32>
    %cst_75 = arith.constant dense<0.000000e+00> : vector<8x512xf32>
    %257 = tpu.matmul %249, %256, %cst_75 {dimension_numbers = #tpu.dot_dimension_numbers<[1], [0], [0], [1], [0, 0, 1, 1], [], []>} : vector<8x128xf32>, vector<128x512xf32>, vector<8x512xf32> -> vector<8x512xf32>
    %258 = arith.addf %255, %257 : vector<8x512xf32>
    %259 = vector.extract_strided_slice %258 {offsets = [0, 0], sizes = [8, 128], strides = [1, 1]} : vector<8x512xf32> to vector<8x128xf32>
    %260 = arith.negf %259 : vector<8x128xf32>
    %261 = math.exp %260 : vector<8x128xf32>
    %cst_76 = arith.constant 1.000000e+00 : f32
    %262 = vector.broadcast %cst_76 : f32 to vector<8x128xf32>
    %263 = arith.addf %262, %261 : vector<8x128xf32>
    %264 = arith.divf %262, %263 : vector<8x128xf32>
    %265 = vector.extract_strided_slice %258 {offsets = [0, 128], sizes = [8, 128], strides = [1, 1]} : vector<8x512xf32> to vector<8x128xf32>
    %266 = arith.negf %265 : vector<8x128xf32>
    %267 = math.exp %266 : vector<8x128xf32>
    %cst_77 = arith.constant 1.000000e+00 : f32
    %268 = vector.broadcast %cst_77 : f32 to vector<8x128xf32>
    %269 = arith.addf %268, %267 : vector<8x128xf32>
    %270 = arith.divf %268, %269 : vector<8x128xf32>
    %271 = vector.extract_strided_slice %258 {offsets = [0, 256], sizes = [8, 128], strides = [1, 1]} : vector<8x512xf32> to vector<8x128xf32>
    %272 = math.tanh %271 : vector<8x128xf32>
    %273 = vector.extract_strided_slice %258 {offsets = [0, 384], sizes = [8, 128], strides = [1, 1]} : vector<8x512xf32> to vector<8x128xf32>
    %274 = arith.negf %273 : vector<8x128xf32>
    %275 = math.exp %274 : vector<8x128xf32>
    %cst_78 = arith.constant 1.000000e+00 : f32
    %276 = vector.broadcast %cst_78 : f32 to vector<8x128xf32>
    %277 = arith.addf %276, %275 : vector<8x128xf32>
    %278 = arith.divf %276, %277 : vector<8x128xf32>
    %279 = arith.mulf %270, %247 : vector<8x128xf32>
    %280 = arith.mulf %264, %272 : vector<8x128xf32>
    %281 = arith.addf %279, %280 : vector<8x128xf32>
    %282 = math.tanh %281 : vector<8x128xf32>
    %283 = arith.mulf %278, %282 : vector<8x128xf32>
    %284 = arith.index_cast %253 : i32 to index
    %c0_79 = arith.constant 0 : index
    %285 = vector.load %arg9[%284, %c0_79] : memref<64x128xf32, #tpu.memory_space<vmem>>, vector<8x128xf32>
    tpu.vector_store %arg9[%284, %c0_79], %283 {strides = array<i32>} : memref<64x128xf32, #tpu.memory_space<vmem>>, vector<8x128xf32>,
    %c8_i32_80 = arith.constant 8 : i32
    %c0_81 = arith.constant 0 : index
    %c0_82 = arith.constant 0 : index
    %286 = vector.load %arg9[%c0_81, %c0_82] : memref<64x128xf32, #tpu.memory_space<vmem>>, vector<64x128xf32>
    %c0_83 = arith.constant 0 : index
    %c0_84 = arith.constant 0 : index
    %287 = vector.load %arg5[%c0_83, %c0_84] : memref<128x128xf32, #tpu.memory_space<vmem>>, vector<128x128xf32>
    %cst_85 = arith.constant dense<0.000000e+00> : vector<64x128xf32>
    %288 = tpu.matmul %286, %287, %cst_85 {dimension_numbers = #tpu.dot_dimension_numbers<[1], [0], [0], [1], [0, 0, 1, 1], [], []>} : vector<64x128xf32>, vector<128x128xf32>, vector<64x128xf32> -> vector<64x128xf32>
    %c0_86 = arith.constant 0 : index
    %c0_87 = arith.constant 0 : index
    %289 = vector.load %arg6[%c0_86, %c0_87] : memref<1x128xf32, #tpu.memory_space<vmem>>, vector<1x128xf32>
    %290 = vector.broadcast %289 : vector<1x128xf32> to vector<64x128xf32>
    %291 = arith.addf %288, %290 : vector<64x128xf32>
    %c0_88 = arith.constant 0 : index
    %c0_89 = arith.constant 0 : index
    %292 = vector.load %arg7[%c0_88, %c0_89] : memref<64x128xf32, #tpu.memory_space<vmem>>, vector<64x128xf32>
    tpu.vector_store %arg7[%c0_88, %c0_89], %291 {strides = array<i32>} : memref<64x128xf32, #tpu.memory_space<vmem>>, vector<64x128xf32>,
    return
  }
  func.func @transform_0(%arg0: i32) -> (i32, i32) {
    %c0_i32 = arith.constant 0 : i32
    %c0_i32_0 = arith.constant 0 : i32
    return %arg0, %c0_i32 : i32, i32
  }
  func.func @transform_1(%arg0: i32) -> (i32, i32) {
    %c0_i32 = arith.constant 0 : i32
    %c0_i32_0 = arith.constant 0 : i32
    %c0_i32_1 = arith.constant 0 : i32
    return %c0_i32, %c0_i32_0 : i32, i32
  }
  func.func @transform_2(%arg0: i32) -> (i32, i32) {
    %c0_i32 = arith.constant 0 : i32
    %c0_i32_0 = arith.constant 0 : i32
    %c0_i32_1 = arith.constant 0 : i32
    return %c0_i32, %c0_i32_0 : i32, i32
  }
  func.func @transform_3(%arg0: i32) -> (i32, i32) {
    %c0_i32 = arith.constant 0 : i32
    %c0_i32_0 = arith.constant 0 : i32
    %c0_i32_1 = arith.constant 0 : i32
    return %c0_i32, %c0_i32_0 : i32, i32
  }
  func.func @transform_4(%arg0: i32) -> (i32, i32) {
    %c0_i32 = arith.constant 0 : i32
    %c0_i32_0 = arith.constant 0 : i32
    %c0_i32_1 = arith.constant 0 : i32
    return %c0_i32, %c0_i32_0 : i32, i32
  }
  func.func @transform_5(%arg0: i32) -> (i32, i32) {
    %c0_i32 = arith.constant 0 : i32
    %c0_i32_0 = arith.constant 0 : i32
    %c0_i32_1 = arith.constant 0 : i32
    return %c0_i32, %c0_i32_0 : i32, i32
  }
  func.func @transform_6(%arg0: i32) -> (i32, i32) {
    %c0_i32 = arith.constant 0 : i32
    %c0_i32_0 = arith.constant 0 : i32
    return %arg0, %c0_i32 : i32, i32
  }
}

</mosaic_0001>

<llo_original>
// kernel: chatbot_forward.1
$region0: #{chatbot_forward.1}
  #allocation0 [shape = 'u32[]', space=smem, size = 0x4, offset = 0x4, fixed_abs, tag = 'smem constant byte address 0x4 - core index']
  #allocation1 [shape = 'u32[72,128]{1,0:T(1,128)}', space=vmem, size = 0x9000, scoped, tag = 'internal scratch']
  #allocation2 [shape = 'f32[64,512]{1,0:T(8,128)}', space=vmem, size = 0x20000, scoped, tag = 'scratch operand']
  #allocation3 [shape = 'f32[64,128]{1,0:T(8,128)}', space=vmem, size = 0x8000, scoped, tag = 'scratch operand']
  %s0 = inlined_call_operand.vmem [shape: s32[64,1], index: 0, kind: input, shape index: {}]
  %s1 = inlined_call_operand.hbm [shape: f32[128,512], index: 1, kind: input, shape index: {}]
  %s2 = inlined_call_operand.vmem [shape: f32[1,512], index: 2, kind: input, shape index: {}]
  %s3 = inlined_call_operand.hbm [shape: f32[128,512], index: 3, kind: input, shape index: {}]
  %s4 = inlined_call_operand.hbm [shape: f32[128,128], index: 4, kind: input, shape index: {}]
  %s5 = inlined_call_operand.vmem [shape: f32[1,128], index: 5, kind: input, shape index: {}]
  %s6 = inlined_call_operand.vmem [shape: f32[64,128], index: 6, kind: output, shape index: {}]
  %s7 = sld [smem:[#allocation0]]
  $region46: #{chatbot_forward.1} parent=0
    _
  %s9 = ssub.s32 1, %s7
  %s10 = scalar_select 0, %s9, %s7
  $region1: #{chatbot_forward.1} parent=0
    #allocation4 [shape = 'u8[262144]{0}', space=vmem, size = 0x40000, scoped, tag = 'input window, operand 1, single buffered']
    #allocation5 [shape = 's32[1]{0}', space=sflag, size = 0x4, scoped, tag = 'scoped memory for chatbot_forward.1']
    #allocation6 [shape = 'u8[262144]{0}', space=vmem, size = 0x40000, scoped, tag = 'input window, operand 3, single buffered']
    #allocation7 [shape = 's32[1]{0}', space=sflag, size = 0x4, scoped, tag = 'scoped memory for chatbot_forward.1']
    #allocation8 [shape = 'u8[65536]{0}', space=vmem, size = 0x10000, scoped, tag = 'input window, operand 4, single buffered']
    %11 = vsyncpa [#allocation5], 0
    %12 = vsyncpa [#allocation7], 0
    // Predicated region
    $region2: #{chatbot_forward.1} parent=1 // pred_check
      _
    $region3: #{chatbot_forward.1} parent=1 // pred_check_branch
      %14 = sbr.rel (0) target = $region5
    $region4: #{chatbot_forward.1} parent=1 // pred_region
      _
    $region5: #{chatbot_forward.1} parent=1 // pred_fallthru
      _
    // Predicated region
    $region6: #{chatbot_forward.1} parent=1 // pred_check
      _
    $region7: #{chatbot_forward.1} parent=1 // pred_check_branch
      %16 = sbr.rel (0) target = $region9
    $region8: #{chatbot_forward.1} parent=1 // pred_region
      %18 = vsyncadd [#allocation5], 0
      %s19 = sshll.u32 %s1, 4
      %s20 = int_to_ptr.hbm [resolvable:$true] %s19
      %s21 = sshll.u32 [#allocation4], 4
      %s22 = int_to_ptr.vmem [resolvable:$true] %s21
      %27 = dma.hbm_to_vmem [thread:$0]  %s20, 8192, %s22, [#allocation5], 512, 512, 32
    $region9: #{chatbot_forward.1} parent=1 // pred_fallthru
      _
    // Predicated region
    $region10: #{chatbot_forward.1} parent=1 // pred_check
      _
    $region11: #{chatbot_forward.1} parent=1 // pred_check_branch
      %29 = sbr.rel (0) target = $region13
    $region12: #{chatbot_forward.1} parent=1 // pred_region
      _
    $region13: #{chatbot_forward.1} parent=1 // pred_fallthru
      _
    // Predicated region
    $region14: #{chatbot_forward.1} parent=1 // pred_check
      _
    $region15: #{chatbot_forward.1} parent=1 // pred_check_branch
      %31 = sbr.rel (0) target = $region17
    $region16: #{chatbot_forward.1} parent=1 // pred_region
      %33 = vsyncadd [#allocation7], 0
      %s34 = sshll.u32 %s3, 4
      %s35 = int_to_ptr.hbm [resolvable:$true] %s34
      %s36 = sshll.u32 [#allocation6], 4
      %s37 = int_to_ptr.vmem [resolvable:$true] %s36
      %42 = dma.hbm_to_vmem [thread:$0]  %s35, 8192, %s37, [#allocation7], 512, 512, 32
    $region17: #{chatbot_forward.1} parent=1 // pred_fallthru
      _
    // Predicated region
    $region18: #{chatbot_forward.1} parent=1 // pred_check
      _
    $region19: #{chatbot_forward.1} parent=1 // pred_check_branch
      %44 = sbr.rel (0) target = $region21
    $region20: #{chatbot_forward.1} parent=1 // pred_region
      %46 = vsyncadd [#allocation7], 0
      %s47 = sshll.u32 %s4, 4
      %s48 = int_to_ptr.hbm [resolvable:$true] %s47
      %s49 = sshll.u32 [#allocation8], 4
      %s50 = int_to_ptr.vmem [resolvable:$true] %s49
      %55 = dma.hbm_to_vmem [thread:$0]  %s48, 2048, %s50, [#allocation7], 128, 128, 8
    $region21: #{chatbot_forward.1} parent=1 // pred_fallthru
      _
    // Predicated region
    $region22: #{chatbot_forward.1} parent=1 // pred_check
      _
    $region23: #{chatbot_forward.1} parent=1 // pred_check_branch
      %57 = sbr.rel (0) target = $region25
    $region24: #{chatbot_forward.1} parent=1 // pred_region
      _
    $region25: #{chatbot_forward.1} parent=1 // pred_fallthru
      _
    // Predicated region
    $region26: #{chatbot_forward.1} parent=1 // pred_check
      _
    $region27: #{chatbot_forward.1} parent=1 // pred_check_branch
      %59 = sbr.rel (0) target = $region29
    $region28: #{chatbot_forward.1} parent=1 // pred_region
      %61 = dma.done [#allocation5], 8192
    $region29: #{chatbot_forward.1} parent=1 // pred_fallthru
      _
    // Predicated region
    $region30: #{chatbot_forward.1} parent=1 // pred_check
      _
    $region31: #{chatbot_forward.1} parent=1 // pred_check_branch
      %63 = sbr.rel (0) target = $region33
    $region32: #{chatbot_forward.1} parent=1 // pred_region
      %65 = dma.done [#allocation7], 8192
    $region33: #{chatbot_forward.1} parent=1 // pred_fallthru
      _
    // Predicated region
    $region34: #{chatbot_forward.1} parent=1 // pred_check
      _
    $region35: #{chatbot_forward.1} parent=1 // pred_check_branch
      %67 = sbr.rel (0) target = $region37
    $region36: #{chatbot_forward.1} parent=1 // pred_region
      %69 = dma.done [#allocation7], 2048
    $region37: #{chatbot_forward.1} parent=1 // pred_fallthru
      _
    %v70 = vld [vmem:[%s0] sm:$0xff]
    %v71 = vld [vmem:[%s0 + $0x8] sm:$0xff]
    %v72 = vld [vmem:[%s0 + $0x10] sm:$0xff]
    %v73 = vld [vmem:[%s0 + $0x18] sm:$0xff]
    %v74 = vld [vmem:[%s0 + $0x20] sm:$0xff]
    %v75 = vld [vmem:[%s0 + $0x28] sm:$0xff]
    %v76 = vld [vmem:[%s0 + $0x30] sm:$0xff]
    %v77 = vld [vmem:[%s0 + $0x38] sm:$0xff]
    %v78 = vlaneseq
    %v79 = vand.u32 %v78, 127
    %80 = vset.pattern.permute.xlu0 0
    %81 = vperm.xlu0 %80, %v70
    %v82 = vpop.permute.xlu0 %81
    %83 = vset.pattern.permute.xlu0 0
    %84 = vperm.xlu0 %83, %v71
    %v85 = vpop.permute.xlu0 %84
    %86 = vset.pattern.permute.xlu0 0
    %87 = vperm.xlu0 %86, %v72
    %v88 = vpop.permute.xlu0 %87
    %89 = vset.pattern.permute.xlu0 0
    %90 = vperm.xlu0 %89, %v73
    %v91 = vpop.permute.xlu0 %90
    %92 = vset.pattern.permute.xlu0 0
    %93 = vperm.xlu0 %92, %v74
    %v94 = vpop.permute.xlu0 %93
    %95 = vset.pattern.permute.xlu0 0
    %96 = vperm.xlu0 %95, %v75
    %v97 = vpop.permute.xlu0 %96
    %98 = vset.pattern.permute.xlu0 0
    %99 = vperm.xlu0 %98, %v76
    %v100 = vpop.permute.xlu0 %99
    %101 = vset.pattern.permute.xlu0 0
    %102 = vperm.xlu0 %101, %v77
    %v103 = vpop.permute.xlu0 %102
    %vm104 = vcmp.eq.s32.totalorder %v82, %v79
    %vm105 = vcmp.eq.s32.totalorder %v85, %v79
    %vm106 = vcmp.eq.s32.totalorder %v88, %v79
    %vm107 = vcmp.eq.s32.totalorder %v91, %v79
    %vm108 = vcmp.eq.s32.totalorder %v94, %v79
    %vm109 = vcmp.eq.s32.totalorder %v97, %v79
    %vm110 = vcmp.eq.s32.totalorder %v100, %v79
    %vm111 = vcmp.eq.s32.totalorder %v103, %v79
    %v112 = vsel %vm104, 1, 0
    %v113 = vsel %vm105, 1, 0
    %v114 = vsel %vm106, 1, 0
    %v115 = vsel %vm107, 1, 0
    %v116 = vsel %vm108, 1, 0
    %v117 = vsel %vm109, 1, 0
    %v118 = vsel %vm110, 1, 0
    %v119 = vsel %vm111, 1, 0
    %v120 = vcvt.s32.f32 %v112
    %v121 = vcvt.s32.f32 %v113
    %v122 = vcvt.s32.f32 %v114
    %v123 = vcvt.s32.f32 %v115
    %v124 = vcvt.s32.f32 %v116
    %v125 = vcvt.s32.f32 %v117
    %v126 = vcvt.s32.f32 %v118
    %v127 = vcvt.s32.f32 %v119
    %v128 = vld [vmem:[#allocation4] sm:$0xff]
    %v129 = vld [vmem:[#allocation4 + $0x8] sm:$0xff]
    %v130 = vld [vmem:[#allocation4 + $0x10] sm:$0xff]
    %v131 = vld [vmem:[#allocation4 + $0x18] sm:$0xff]
    %v132 = vld [vmem:[#allocation4 + $0x20] sm:$0xff]
    %v133 = vld [vmem:[#allocation4 + $0x28] sm:$0xff]
    %v134 = vld [vmem:[#allocation4 + $0x30] sm:$0xff]
    %v135 = vld [vmem:[#allocation4 + $0x38] sm:$0xff]
    %v136 = vld [vmem:[#allocation4 + $0x40] sm:$0xff]
    %v137 = vld [vmem:[#allocation4 + $0x48] sm:$0xff]
    %v138 = vld [vmem:[#allocation4 + $0x50] sm:$0xff]
    %v139 = vld [vmem:[#allocation4 + $0x58] sm:$0xff]
    %v140 = vld [vmem:[#allocation4 + $0x60] sm:$0xff]
    %v141 = vld [vmem:[#allocation4 + $0x68] sm:$0xff]
    %v142 = vld [vmem:[#allocation4 + $0x70] sm:$0xff]
    %v143 = vld [vmem:[#allocation4 + $0x78] sm:$0xff]
    %v144 = vld [vmem:[#allocation4 + $0x80] sm:$0xff]
    %v145 = vld [vmem:[#allocation4 + $0x88] sm:$0xff]
    %v146 = vld [vmem:[#allocation4 + $0x90] sm:$0xff]
    %v147 = vld [vmem:[#allocation4 + $0x98] sm:$0xff]
    %v148 = vld [vmem:[#allocation4 + $0xa0] sm:$0xff]
    %v149 = vld [vmem:[#allocation4 + $0xa8] sm:$0xff]
    %v150 = vld [vmem:[#allocation4 + $0xb0] sm:$0xff]
    %v151 = vld [vmem:[#allocation4 + $0xb8] sm:$0xff]
    %v152 = vld [vmem:[#allocation4 + $0xc0] sm:$0xff]
    %v153 = vld [vmem:[#allocation4 + $0xc8] sm:$0xff]
    %v154 = vld [vmem:[#allocation4 + $0xd0] sm:$0xff]
    %v155 = vld [vmem:[#allocation4 + $0xd8] sm:$0xff]
    %v156 = vld [vmem:[#allocation4 + $0xe0] sm:$0xff]
    %v157 = vld [vmem:[#allocation4 + $0xe8] sm:$0xff]
    %v158 = vld [vmem:[#allocation4 + $0xf0] sm:$0xff]
    %v159 = vld [vmem:[#allocation4 + $0xf8] sm:$0xff]
    %v160 = vld [vmem:[#allocation4 + $0x100] sm:$0xff]
    %v161 = vld [vmem:[#allocation4 + $0x108] sm:$0xff]
    %v162 = vld [vmem:[#allocation4 + $0x110] sm:$0xff]
    %v163 = vld [vmem:[#allocation4 + $0x118] sm:$0xff]
    %v164 = vld [vmem:[#allocation4 + $0x120] sm:$0xff]
    %v165 = vld [vmem:[#allocation4 + $0x128] sm:$0xff]
    %v166 = vld [vmem:[#allocation4 + $0x130] sm:$0xff]
    %v167 = vld [vmem:[#allocation4 + $0x138] sm:$0xff]
    %v168 = vld [vmem:[#allocation4 + $0x140] sm:$0xff]
    %v169 = vld [vmem:[#allocation4 + $0x148] sm:$0xff]
    %v170 = vld [vmem:[#allocation4 + $0x150] sm:$0xff]
    %v171 = vld [vmem:[#allocation4 + $0x158] sm:$0xff]
    %v172 = vld [vmem:[#allocation4 + $0x160] sm:$0xff]
    %v173 = vld [vmem:[#allocation4 + $0x168] sm:$0xff]
    %v174 = vld [vmem:[#allocation4 + $0x170] sm:$0xff]
    %v175 = vld [vmem:[#allocation4 + $0x178] sm:$0xff]
    %v176 = vld [vmem:[#allocation4 + $0x180] sm:$0xff]
    %v177 = vld [vmem:[#allocation4 + $0x188] sm:$0xff]
    %v178 = vld [vmem:[#allocation4 + $0x190] sm:$0xff]
    %v179 = vld [vmem:[#allocation4 + $0x198] sm:$0xff]
    %v180 = vld [vmem:[#allocation4 + $0x1a0] sm:$0xff]
    %v181 = vld [vmem:[#allocation4 + $0x1a8] sm:$0xff]
    %v182 = vld [vmem:[#allocation4 + $0x1b0] sm:$0xff]
    %v183 = vld [vmem:[#allocation4 + $0x1b8] sm:$0xff]
    %v184 = vld [vmem:[#allocation4 + $0x1c0] sm:$0xff]
    %v185 = vld [vmem:[#allocation4 + $0x1c8] sm:$0xff]
    %v186 = vld [vmem:[#allocation4 + $0x1d0] sm:$0xff]
    %v187 = vld [vmem:[#allocation4 + $0x1d8] sm:$0xff]
    %v188 = vld [vmem:[#allocation4 + $0x1e0] sm:$0xff]
    %v189 = vld [vmem:[#allocation4 + $0x1e8] sm:$0xff]
    %v190 = vld [vmem:[#allocation4 + $0x1f0] sm:$0xff]
    %v191 = vld [vmem:[#allocation4 + $0x1f8] sm:$0xff]
    %v192 = vld [vmem:[%s2] sm:$0xf]
    %v194 = vperm.slane %v192, 0
    %v195 = vperm.slane %v192, 1
    %v196 = vperm.slane %v192, 2
    %v197 = vperm.slane %v192, 3
    %202 = vmatpush.msra.mxu0 %v188
    %203 = vmatpush.msra.mxu0 %v184
    %204 = vmatpush.msra.mxu0 %v180
    %205 = vmatpush.msra.mxu0 %v176
    %206 = vmatpush.msra.mxu0 %v172
    %207 = vmatpush.msra.mxu0 %v168
    %208 = vmatpush.msra.mxu0 %v164
    %209 = vmatpush.msra.mxu0 %v160
    %210 = vmatpush.msra.mxu0 %v156
    %211 = vmatpush.msra.mxu0 %v152
    %212 = vmatpush.msra.mxu0 %v148
    %213 = vmatpush.msra.mxu0 %v144
    %214 = vmatpush.msra.mxu0 %v140
    %215 = vmatpush.msra.mxu0 %v136
    %216 = vmatpush.msra.mxu0 %v132
    %217 = vmatpush.msra.mxu0 %v128
    %218 = vmatmul.f32.gmra.mxu0 %v120
    %v219 = vpop.f32.mrf.mxu0
    %v220 = vadd.f32 %v194, %v219
    %221 = vmatmul.f32.gmra.mxu0 %v121
    %v222 = vpop.f32.mrf.mxu0
    %v223 = vadd.f32 %v194, %v222
    %224 = vmatmul.f32.gmra.mxu0 %v122
    %v225 = vpop.f32.mrf.mxu0
    %v226 = vadd.f32 %v194, %v225
    %227 = vmatmul.f32.gmra.mxu0 %v123
    %v228 = vpop.f32.mrf.mxu0
    %v229 = vadd.f32 %v194, %v228
    %230 = vmatmul.f32.gmra.mxu0 %v124
    %v231 = vpop.f32.mrf.mxu0
    %v232 = vadd.f32 %v194, %v231
    %233 = vmatmul.f32.gmra.mxu0 %v125
    %v234 = vpop.f32.mrf.mxu0
    %v235 = vadd.f32 %v194, %v234
    %236 = vmatmul.f32.gmra.mxu0 %v126
    %v237 = vpop.f32.mrf.mxu0
    %v238 = vadd.f32 %v194, %v237
    %239 = vmatmul.f32.gmra.mxu0 %v127
    %v240 = vpop.f32.mrf.mxu0
    %v241 = vadd.f32 %v194, %v240
    %242 = vdwg.mxu0
    %243 = vmatpush.msra.mxu0 %v189
    %244 = vmatpush.msra.mxu0 %v185
    %245 = vmatpush.msra.mxu0 %v181
    %246 = vmatpush.msra.mxu0 %v177
    %247 = vmatpush.msra.mxu0 %v173
    %248 = vmatpush.msra.mxu0 %v169
    %249 = vmatpush.msra.mxu0 %v165
    %250 = vmatpush.msra.mxu0 %v161
    %251 = vmatpush.msra.mxu0 %v157
    %252 = vmatpush.msra.mxu0 %v153
    %253 = vmatpush.msra.mxu0 %v149
    %254 = vmatpush.msra.mxu0 %v145
    %255 = vmatpush.msra.mxu0 %v141
    %256 = vmatpush.msra.mxu0 %v137
    %257 = vmatpush.msra.mxu0 %v133
    %258 = vmatpush.msra.mxu0 %v129
    %259 = vmatmul.f32.gmra.mxu0 %v120
    %v260 = vpop.f32.mrf.mxu0
    %v261 = vadd.f32 %v195, %v260
    %262 = vmatmul.f32.gmra.mxu0 %v121
    %v263 = vpop.f32.mrf.mxu0
    %v264 = vadd.f32 %v195, %v263
    %265 = vmatmul.f32.gmra.mxu0 %v122
    %v266 = vpop.f32.mrf.mxu0
    %v267 = vadd.f32 %v195, %v266
    %268 = vmatmul.f32.gmra.mxu0 %v123
    %v269 = vpop.f32.mrf.mxu0
    %v270 = vadd.f32 %v195, %v269
    %271 = vmatmul.f32.gmra.mxu0 %v124
    %v272 = vpop.f32.mrf.mxu0
    %v273 = vadd.f32 %v195, %v272
    %274 = vmatmul.f32.gmra.mxu0 %v125
    %v275 = vpop.f32.mrf.mxu0
    %v276 = vadd.f32 %v195, %v275
    %277 = vmatmul.f32.gmra.mxu0 %v126
    %v278 = vpop.f32.mrf.mxu0
    %v279 = vadd.f32 %v195, %v278
    %280 = vmatmul.f32.gmra.mxu0 %v127
    %v281 = vpop.f32.mrf.mxu0
    %v282 = vadd.f32 %v195, %v281
    %283 = vdwg.mxu0
    %284 = vmatpush.msra.mxu0 %v190
    %285 = vmatpush.msra.mxu0 %v186
    %286 = vmatpush.msra.mxu0 %v182
    %287 = vmatpush.msra.mxu0 %v178
    %288 = vmatpush.msra.mxu0 %v174
    %289 = vmatpush.msra.mxu0 %v170
    %290 = vmatpush.msra.mxu0 %v166
    %291 = vmatpush.msra.mxu0 %v162
    %292 = vmatpush.msra.mxu0 %v158
    %293 = vmatpush.msra.mxu0 %v154
    %294 = vmatpush.msra.mxu0 %v150
    %295 = vmatpush.msra.mxu0 %v146
    %296 = vmatpush.msra.mxu0 %v142
    %297 = vmatpush.msra.mxu0 %v138
    %298 = vmatpush.msra.mxu0 %v134
    %299 = vmatpush.msra.mxu0 %v130
    %300 = vmatmul.f32.gmra.mxu0 %v120
    %v301 = vpop.f32.mrf.mxu0
    %v302 = vadd.f32 %v196, %v301
    %303 = vmatmul.f32.gmra.mxu0 %v121
    %v304 = vpop.f32.mrf.mxu0
    %v305 = vadd.f32 %v196, %v304
    %306 = vmatmul.f32.gmra.mxu0 %v122
    %v307 = vpop.f32.mrf.mxu0
    %v308 = vadd.f32 %v196, %v307
    %309 = vmatmul.f32.gmra.mxu0 %v123
    %v310 = vpop.f32.mrf.mxu0
    %v311 = vadd.f32 %v196, %v310
    %312 = vmatmul.f32.gmra.mxu0 %v124
    %v313 = vpop.f32.mrf.mxu0
    %v314 = vadd.f32 %v196, %v313
    %315 = vmatmul.f32.gmra.mxu0 %v125
    %v316 = vpop.f32.mrf.mxu0
    %v317 = vadd.f32 %v196, %v316
    %318 = vmatmul.f32.gmra.mxu0 %v126
    %v319 = vpop.f32.mrf.mxu0
    %v320 = vadd.f32 %v196, %v319
    %321 = vmatmul.f32.gmra.mxu0 %v127
    %v322 = vpop.f32.mrf.mxu0
    %v323 = vadd.f32 %v196, %v322
    %324 = vdwg.mxu0
    %325 = vmatpush.msra.mxu0 %v191
    %326 = vmatpush.msra.mxu0 %v187
    %327 = vmatpush.msra.mxu0 %v183
    %328 = vmatpush.msra.mxu0 %v179
    %329 = vmatpush.msra.mxu0 %v175
    %330 = vmatpush.msra.mxu0 %v171
    %331 = vmatpush.msra.mxu0 %v167
    %332 = vmatpush.msra.mxu0 %v163
    %333 = vmatpush.msra.mxu0 %v159
    %334 = vmatpush.msra.mxu0 %v155
    %335 = vmatpush.msra.mxu0 %v151
    %336 = vmatpush.msra.mxu0 %v147
    %337 = vmatpush.msra.mxu0 %v143
    %338 = vmatpush.msra.mxu0 %v139
    %339 = vmatpush.msra.mxu0 %v135
    %340 = vmatpush.msra.mxu0 %v131
    %341 = vmatmul.f32.gmra.mxu0 %v120
    %v342 = vpop.f32.mrf.mxu0
    %v343 = vadd.f32 %v197, %v342
    %344 = vmatmul.f32.gmra.mxu0 %v121
    %v345 = vpop.f32.mrf.mxu0
    %v346 = vadd.f32 %v197, %v345
    %347 = vmatmul.f32.gmra.mxu0 %v122
    %v348 = vpop.f32.mrf.mxu0
    %v349 = vadd.f32 %v197, %v348
    %350 = vmatmul.f32.gmra.mxu0 %v123
    %v351 = vpop.f32.mrf.mxu0
    %v352 = vadd.f32 %v197, %v351
    %353 = vmatmul.f32.gmra.mxu0 %v124
    %v354 = vpop.f32.mrf.mxu0
    %v355 = vadd.f32 %v197, %v354
    %356 = vmatmul.f32.gmra.mxu0 %v125
    %v357 = vpop.f32.mrf.mxu0
    %v358 = vadd.f32 %v197, %v357
    %359 = vmatmul.f32.gmra.mxu0 %v126
    %v360 = vpop.f32.mrf.mxu0
    %v361 = vadd.f32 %v197, %v360
    %362 = vmatmul.f32.gmra.mxu0 %v127
    %v363 = vpop.f32.mrf.mxu0
    %v364 = vadd.f32 %v197, %v363
    %365 = vdwg.mxu0
    %366 = vst [vmem:[#allocation2] sm:$0xff] %v220
    %367 = vst [vmem:[#allocation2 + $0x8] sm:$0xff] %v261
    %368 = vst [vmem:[#allocation2 + $0x10] sm:$0xff] %v302
    %369 = vst [vmem:[#allocation2 + $0x18] sm:$0xff] %v343
    %370 = vst [vmem:[#allocation2 + $0x20] sm:$0xff] %v223
    %371 = vst [vmem:[#allocation2 + $0x28] sm:$0xff] %v264
    %372 = vst [vmem:[#allocation2 + $0x30] sm:$0xff] %v305
    %373 = vst [vmem:[#allocation2 + $0x38] sm:$0xff] %v346
    %374 = vst [vmem:[#allocation2 + $0x40] sm:$0xff] %v226
    %375 = vst [vmem:[#allocation2 + $0x48] sm:$0xff] %v267
    %376 = vst [vmem:[#allocation2 + $0x50] sm:$0xff] %v308
    %377 = vst [vmem:[#allocation2 + $0x58] sm:$0xff] %v349
    %378 = vst [vmem:[#allocation2 + $0x60] sm:$0xff] %v229
    %379 = vst [vmem:[#allocation2 + $0x68] sm:$0xff] %v270
    %380 = vst [vmem:[#allocation2 + $0x70] sm:$0xff] %v311
    %381 = vst [vmem:[#allocation2 + $0x78] sm:$0xff] %v352
    %382 = vst [vmem:[#allocation2 + $0x80] sm:$0xff] %v232
    %383 = vst [vmem:[#allocation2 + $0x88] sm:$0xff] %v273
    %384 = vst [vmem:[#allocation2 + $0x90] sm:$0xff] %v314
    %385 = vst [vmem:[#allocation2 + $0x98] sm:$0xff] %v355
    %386 = vst [vmem:[#allocation2 + $0xa0] sm:$0xff] %v235
    %387 = vst [vmem:[#allocation2 + $0xa8] sm:$0xff] %v276
    %388 = vst [vmem:[#allocation2 + $0xb0] sm:$0xff] %v317
    %389 = vst [vmem:[#allocation2 + $0xb8] sm:$0xff] %v358
    %390 = vst [vmem:[#allocation2 + $0xc0] sm:$0xff] %v238
    %391 = vst [vmem:[#allocation2 + $0xc8] sm:$0xff] %v279
    %392 = vst [vmem:[#allocation2 + $0xd0] sm:$0xff] %v320
    %393 = vst [vmem:[#allocation2 + $0xd8] sm:$0xff] %v361
    %394 = vst [vmem:[#allocation2 + $0xe0] sm:$0xff] %v241
    %395 = vst [vmem:[#allocation2 + $0xe8] sm:$0xff] %v282
    %396 = vst [vmem:[#allocation2 + $0xf0] sm:$0xff] %v323
    %397 = vst [vmem:[#allocation2 + $0xf8] sm:$0xff] %v364
    %s398 = smul.u32 0, 4
    %s399 = smul.addr %s398, 8
    %s400 = scalar_lea.vmem [#allocation2], %s399
    %v401 = vld [vmem:[%s400] sm:$0xff]
    %v402 = vld [vmem:[%s400 + $0x8] sm:$0xff]
    %v403 = vld [vmem:[%s400 + $0x10] sm:$0xff]
    %v404 = vld [vmem:[%s400 + $0x18] sm:$0xff]
    %v405 = vld [vmem:[#allocation6] sm:$0xff]
    %v406 = vld [vmem:[#allocation6 + $0x8] sm:$0xff]
    %v407 = vld [vmem:[#allocation6 + $0x10] sm:$0xff]
    %v408 = vld [vmem:[#allocation6 + $0x18] sm:$0xff]
    %v409 = vld [vmem:[#allocation6 + $0x20] sm:$0xff]
    %v410 = vld [vmem:[#allocation6 + $0x28] sm:$0xff]
    %v411 = vld [vmem:[#allocation6 + $0x30] sm:$0xff]
    %v412 = vld [vmem:[#allocation6 + $0x38] sm:$0xff]
    %v413 = vld [vmem:[#allocation6 + $0x40] sm:$0xff]
    %v414 = vld [vmem:[#allocation6 + $0x48] sm:$0xff]
    %v415 = vld [vmem:[#allocation6 + $0x50] sm:$0xff]
    %v416 = vld [vmem:[#allocation6 + $0x58] sm:$0xff]
    %v417 = vld [vmem:[#allocation6 + $0x60] sm:$0xff]
    %v418 = vld [vmem:[#allocation6 + $0x68] sm:$0xff]
    %v419 = vld [vmem:[#allocation6 + $0x70] sm:$0xff]
    %v420 = vld [vmem:[#allocation6 + $0x78] sm:$0xff]
    %v421 = vld [vmem:[#allocation6 + $0x80] sm:$0xff]
    %v422 = vld [vmem:[#allocation6 + $0x88] sm:$0xff]
    %v423 = vld [vmem:[#allocation6 + $0x90] sm:$0xff]
    %v424 = vld [vmem:[#allocation6 + $0x98] sm:$0xff]
    %v425 = vld [vmem:[#allocation6 + $0xa0] sm:$0xff]
    %v426 = vld [vmem:[#allocation6 + $0xa8] sm:$0xff]
    %v427 = vld [vmem:[#allocation6 + $0xb0] sm:$0xff]
    %v428 = vld [vmem:[#allocation6 + $0xb8] sm:$0xff]
    %v429 = vld [vmem:[#allocation6 + $0xc0] sm:$0xff]
    %v430 = vld [vmem:[#allocation6 + $0xc8] sm:$0xff]
    %v431 = vld [vmem:[#allocation6 + $0xd0] sm:$0xff]
    %v432 = vld [vmem:[#allocation6 + $0xd8] sm:$0xff]
    %v433 = vld [vmem:[#allocation6 + $0xe0] sm:$0xff]
    %v434 = vld [vmem:[#allocation6 + $0xe8] sm:$0xff]
    %v435 = vld [vmem:[#allocation6 + $0xf0] sm:$0xff]
    %v436 = vld [vmem:[#allocation6 + $0xf8] sm:$0xff]
    %v437 = vld [vmem:[#allocation6 + $0x100] sm:$0xff]
    %v438 = vld [vmem:[#allocation6 + $0x108] sm:$0xff]
    %v439 = vld [vmem:[#allocation6 + $0x110] sm:$0xff]
    %v440 = vld [vmem:[#allocation6 + $0x118] sm:$0xff]
    %v441 = vld [vmem:[#allocation6 + $0x120] sm:$0xff]
    %v442 = vld [vmem:[#allocation6 + $0x128] sm:$0xff]
    %v443 = vld [vmem:[#allocation6 + $0x130] sm:$0xff]
    %v444 = vld [vmem:[#allocation6 + $0x138] sm:$0xff]
    %v445 = vld [vmem:[#allocation6 + $0x140] sm:$0xff]
    %v446 = vld [vmem:[#allocation6 + $0x148] sm:$0xff]
    %v447 = vld [vmem:[#allocation6 + $0x150] sm:$0xff]
    %v448 = vld [vmem:[#allocation6 + $0x158] sm:$0xff]
    %v449 = vld [vmem:[#allocation6 + $0x160] sm:$0xff]
    %v450 = vld [vmem:[#allocation6 + $0x168] sm:$0xff]
    %v451 = vld [vmem:[#allocation6 + $0x170] sm:$0xff]
    %v452 = vld [vmem:[#allocation6 + $0x178] sm:$0xff]
    %v453 = vld [vmem:[#allocation6 + $0x180] sm:$0xff]
    %v454 = vld [vmem:[#allocation6 + $0x188] sm:$0xff]
    %v455 = vld [vmem:[#allocation6 + $0x190] sm:$0xff]
    %v456 = vld [vmem:[#allocation6 + $0x198] sm:$0xff]
    %v457 = vld [vmem:[#allocation6 + $0x1a0] sm:$0xff]
    %v458 = vld [vmem:[#allocation6 + $0x1a8] sm:$0xff]
    %v459 = vld [vmem:[#allocation6 + $0x1b0] sm:$0xff]
    %v460 = vld [vmem:[#allocation6 + $0x1b8] sm:$0xff]
    %v461 = vld [vmem:[#allocation6 + $0x1c0] sm:$0xff]
    %v462 = vld [vmem:[#allocation6 + $0x1c8] sm:$0xff]
    %v463 = vld [vmem:[#allocation6 + $0x1d0] sm:$0xff]
    %v464 = vld [vmem:[#allocation6 + $0x1d8] sm:$0xff]
    %v465 = vld [vmem:[#allocation6 + $0x1e0] sm:$0xff]
    %v466 = vld [vmem:[#allocation6 + $0x1e8] sm:$0xff]
    %v467 = vld [vmem:[#allocation6 + $0x1f0] sm:$0xff]
    %v468 = vld [vmem:[#allocation6 + $0x1f8] sm:$0xff]
    %469 = vmatpush.msra.mxu0 %v465
    %470 = vmatpush.msra.mxu0 %v461
    %471 = vmatpush.msra.mxu0 %v457
    %472 = vmatpush.msra.mxu0 %v453
    %473 = vmatpush.msra.mxu0 %v449
    %474 = vmatpush.msra.mxu0 %v445
    %475 = vmatpush.msra.mxu0 %v441
    %476 = vmatpush.msra.mxu0 %v437
    %477 = vmatpush.msra.mxu0 %v433
    %478 = vmatpush.msra.mxu0 %v429
    %479 = vmatpush.msra.mxu0 %v425
    %480 = vmatpush.msra.mxu0 %v421
    %481 = vmatpush.msra.mxu0 %v417
    %482 = vmatpush.msra.mxu0 %v413
    %483 = vmatpush.msra.mxu0 %v409
    %484 = vmatpush.msra.mxu0 %v405
    %485 = vmatmul.f32.gmra.mxu0 0.0
    %v486 = vpop.f32.mrf.mxu0
    %v487 = vadd.f32 0.0, %v486
    %488 = vdwg.mxu0
    %489 = vmatpush.msra.mxu0 %v466
    %490 = vmatpush.msra.mxu0 %v462
    %491 = vmatpush.msra.mxu0 %v458
    %492 = vmatpush.msra.mxu0 %v454
    %493 = vmatpush.msra.mxu0 %v450
    %494 = vmatpush.msra.mxu0 %v446
    %495 = vmatpush.msra.mxu0 %v442
    %496 = vmatpush.msra.mxu0 %v438
    %497 = vmatpush.msra.mxu0 %v434
    %498 = vmatpush.msra.mxu0 %v430
    %499 = vmatpush.msra.mxu0 %v426
    %500 = vmatpush.msra.mxu0 %v422
    %501 = vmatpush.msra.mxu0 %v418
    %502 = vmatpush.msra.mxu0 %v414
    %503 = vmatpush.msra.mxu0 %v410
    %504 = vmatpush.msra.mxu0 %v406
    %505 = vmatmul.f32.gmra.mxu0 0.0
    %v506 = vpop.f32.mrf.mxu0
    %v507 = vadd.f32 0.0, %v506
    %508 = vdwg.mxu0
    %509 = vmatpush.msra.mxu0 %v467
    %510 = vmatpush.msra.mxu0 %v463
    %511 = vmatpush.msra.mxu0 %v459
    %512 = vmatpush.msra.mxu0 %v455
    %513 = vmatpush.msra.mxu0 %v451
    %514 = vmatpush.msra.mxu0 %v447
    %515 = vmatpush.msra.mxu0 %v443
    %516 = vmatpush.msra.mxu0 %v439
    %517 = vmatpush.msra.mxu0 %v435
    %518 = vmatpush.msra.mxu0 %v431
    %519 = vmatpush.msra.mxu0 %v427
    %520 = vmatpush.msra.mxu0 %v423
    %521 = vmatpush.msra.mxu0 %v419
    %522 = vmatpush.msra.mxu0 %v415
    %523 = vmatpush.msra.mxu0 %v411
    %524 = vmatpush.msra.mxu0 %v407
    %525 = vmatmul.f32.gmra.mxu0 0.0
    %v526 = vpop.f32.mrf.mxu0
    %v527 = vadd.f32 0.0, %v526
    %528 = vdwg.mxu0
    %529 = vmatpush.msra.mxu0 %v468
    %530 = vmatpush.msra.mxu0 %v464
    %531 = vmatpush.msra.mxu0 %v460
    %532 = vmatpush.msra.mxu0 %v456
    %533 = vmatpush.msra.mxu0 %v452
    %534 = vmatpush.msra.mxu0 %v448
    %535 = vmatpush.msra.mxu0 %v444
    %536 = vmatpush.msra.mxu0 %v440
    %537 = vmatpush.msra.mxu0 %v436
    %538 = vmatpush.msra.mxu0 %v432
    %539 = vmatpush.msra.mxu0 %v428
    %540 = vmatpush.msra.mxu0 %v424
    %541 = vmatpush.msra.mxu0 %v420
    %542 = vmatpush.msra.mxu0 %v416
    %543 = vmatpush.msra.mxu0 %v412
    %544 = vmatpush.msra.mxu0 %v408
    %545 = vmatmul.f32.gmra.mxu0 0.0
    %v546 = vpop.f32.mrf.mxu0
    %v547 = vadd.f32 0.0, %v546
    %548 = vdwg.mxu0
    %v549 = vadd.f32 %v401, %v487
    %v550 = vadd.f32 %v402, %v507
    %v551 = vadd.f32 %v403, %v527
    %v552 = vadd.f32 %v404, %v547
    %v553 = vxor.u32 %v549, 2147483648
    %v554 = vmul.f32 %v553, 1.442695
    %v555 = vpow.pop %v554
    %v556 = vadd.f32 %v555, 1.0
    %v557 = vrcp.pop %v556
    %v558 = vmul.f32 %v556, %v557
    %v559 = vsub.f32 1.0, %v558
    %v560 = vmul.f32 %v557, %v559
    %v561 = vadd.f32 %v557, %v560
    %vm562 = vweird.f32 %v556
    %vm563 = vweird.f32 %v557
    %vm564 = vmor %vm562, %vm563
    %v565 = vsel %vm564, %v557, %v561
    %v566 = vand.u32 2147483647, %v556
    %vm567 = vcmp.eq.f32.partialorder %v566, 8.507059e+37
    %v568 = vand.u32 %v556, 2147483648
    %v569 = vor.u32 1.1754944e-38, %v568
    %v570 = vsel %vm567, %v569, %v565
    %v571 = vmul.f32 1.0, %v570
    %v572 = vxor.u32 %v550, 2147483648
    %v573 = vmul.f32 %v572, 1.442695
    %v574 = vpow.pop %v573
    %v575 = vadd.f32 %v574, 1.0
    %v576 = vrcp.pop %v575
    %v577 = vmul.f32 %v575, %v576
    %v578 = vsub.f32 1.0, %v577
    %v579 = vmul.f32 %v576, %v578
    %v580 = vadd.f32 %v576, %v579
    %vm581 = vweird.f32 %v575
    %vm582 = vweird.f32 %v576
    %vm583 = vmor %vm581, %vm582
    %v584 = vsel %vm583, %v576, %v580
    %v585 = vand.u32 2147483647, %v575
    %vm586 = vcmp.eq.f32.partialorder %v585, 8.507059e+37
    %v587 = vand.u32 %v575, 2147483648
    %v588 = vor.u32 1.1754944e-38, %v587
    %v589 = vsel %vm586, %v588, %v584
    %v590 = vmul.f32 1.0, %v589
    %v591 = vtanh.pop %v551
    %v592 = vxor.u32 %v552, 2147483648
    %v593 = vmul.f32 %v592, 1.442695
    %v594 = vpow.pop %v593
    %v595 = vadd.f32 %v594, 1.0
    %v596 = vrcp.pop %v595
    %v597 = vmul.f32 %v595, %v596
    %v598 = vsub.f32 1.0, %v597
    %v599 = vmul.f32 %v596, %v598
    %v600 = vadd.f32 %v596, %v599
    %vm601 = vweird.f32 %v595
    %vm602 = vweird.f32 %v596
    %vm603 = vmor %vm601, %vm602
    %v604 = vsel %vm603, %v596, %v600
    %v605 = vand.u32 2147483647, %v595
    %vm606 = vcmp.eq.f32.partialorder %v605, 8.507059e+37
    %v607 = vand.u32 %v595, 2147483648
    %v608 = vor.u32 1.1754944e-38, %v607
    %v609 = vsel %vm606, %v608, %v604
    %v610 = vmul.f32 1.0, %v609
    %v611 = vmul.f32 %v590, 0.0
    %v612 = vmul.f32 %v571, %v591
    %v613 = vadd.f32 %v611, %v612
    %v614 = vtanh.pop %v613
    %v615 = vmul.f32 %v610, %v614
    %616 = vst [vmem:[#allocation3] sm:$0xff] %v615
    %s617 = smul.u32 1, 4
    %s618 = smul.addr %s617, 8
    %s619 = scalar_lea.vmem [#allocation2], %s618
    %v620 = vld [vmem:[%s619] sm:$0xff]
    %v621 = vld [vmem:[%s619 + $0x8] sm:$0xff]
    %v622 = vld [vmem:[%s619 + $0x10] sm:$0xff]
    %v623 = vld [vmem:[%s619 + $0x18] sm:$0xff]
    %v624 = vld [vmem:[#allocation6] sm:$0xff]
    %v625 = vld [vmem:[#allocation6 + $0x8] sm:$0xff]
    %v626 = vld [vmem:[#allocation6 + $0x10] sm:$0xff]
    %v627 = vld [vmem:[#allocation6 + $0x18] sm:$0xff]
    %v628 = vld [vmem:[#allocation6 + $0x20] sm:$0xff]
    %v629 = vld [vmem:[#allocation6 + $0x28] sm:$0xff]
    %v630 = vld [vmem:[#allocation6 + $0x30] sm:$0xff]
    %v631 = vld [vmem:[#allocation6 + $0x38] sm:$0xff]
    %v632 = vld [vmem:[#allocation6 + $0x40] sm:$0xff]
    %v633 = vld [vmem:[#allocation6 + $0x48] sm:$0xff]
    %v634 = vld [vmem:[#allocation6 + $0x50] sm:$0xff]
    %v635 = vld [vmem:[#allocation6 + $0x58] sm:$0xff]
    %v636 = vld [vmem:[#allocation6 + $0x60] sm:$0xff]
    %v637 = vld [vmem:[#allocation6 + $0x68] sm:$0xff]
    %v638 = vld [vmem:[#allocation6 + $0x70] sm:$0xff]
    %v639 = vld [vmem:[#allocation6 + $0x78] sm:$0xff]
    %v640 = vld [vmem:[#allocation6 + $0x80] sm:$0xff]
    %v641 = vld [vmem:[#allocation6 + $0x88] sm:$0xff]
    %v642 = vld [vmem:[#allocation6 + $0x90] sm:$0xff]
    %v643 = vld [vmem:[#allocation6 + $0x98] sm:$0xff]
    %v644 = vld [vmem:[#allocation6 + $0xa0] sm:$0xff]
    %v645 = vld [vmem:[#allocation6 + $0xa8] sm:$0xff]
    %v646 = vld [vmem:[#allocation6 + $0xb0] sm:$0xff]
    %v647 = vld [vmem:[#allocation6 + $0xb8] sm:$0xff]
    %v648 = vld [vmem:[#allocation6 + $0xc0] sm:$0xff]
    %v649 = vld [vmem:[#allocation6 + $0xc8] sm:$0xff]
    %v650 = vld [vmem:[#allocation6 + $0xd0] sm:$0xff]
    %v651 = vld [vmem:[#allocation6 + $0xd8] sm:$0xff]
    %v652 = vld [vmem:[#allocation6 + $0xe0] sm:$0xff]
    %v653 = vld [vmem:[#allocation6 + $0xe8] sm:$0xff]
    %v654 = vld [vmem:[#allocation6 + $0xf0] sm:$0xff]
    %v655 = vld [vmem:[#allocation6 + $0xf8] sm:$0xff]
    %v656 = vld [vmem:[#allocation6 + $0x100] sm:$0xff]
    %v657 = vld [vmem:[#allocation6 + $0x108] sm:$0xff]
    %v658 = vld [vmem:[#allocation6 + $0x110] sm:$0xff]
    %v659 = vld [vmem:[#allocation6 + $0x118] sm:$0xff]
    %v660 = vld [vmem:[#allocation6 + $0x120] sm:$0xff]
    %v661 = vld [vmem:[#allocation6 + $0x128] sm:$0xff]
    %v662 = vld [vmem:[#allocation6 + $0x130] sm:$0xff]
    %v663 = vld [vmem:[#allocation6 + $0x138] sm:$0xff]
    %v664 = vld [vmem:[#allocation6 + $0x140] sm:$0xff]
    %v665 = vld [vmem:[#allocation6 + $0x148] sm:$0xff]
    %v666 = vld [vmem:[#allocation6 + $0x150] sm:$0xff]
    %v667 = vld [vmem:[#allocation6 + $0x158] sm:$0xff]
    %v668 = vld [vmem:[#allocation6 + $0x160] sm:$0xff]
    %v669 = vld [vmem:[#allocation6 + $0x168] sm:$0xff]
    %v670 = vld [vmem:[#allocation6 + $0x170] sm:$0xff]
    %v671 = vld [vmem:[#allocation6 + $0x178] sm:$0xff]
    %v672 = vld [vmem:[#allocation6 + $0x180] sm:$0xff]
    %v673 = vld [vmem:[#allocation6 + $0x188] sm:$0xff]
    %v674 = vld [vmem:[#allocation6 + $0x190] sm:$0xff]
    %v675 = vld [vmem:[#allocation6 + $0x198] sm:$0xff]
    %v676 = vld [vmem:[#allocation6 + $0x1a0] sm:$0xff]
    %v677 = vld [vmem:[#allocation6 + $0x1a8] sm:$0xff]
    %v678 = vld [vmem:[#allocation6 + $0x1b0] sm:$0xff]
    %v679 = vld [vmem:[#allocation6 + $0x1b8] sm:$0xff]
    %v680 = vld [vmem:[#allocation6 + $0x1c0] sm:$0xff]
    %v681 = vld [vmem:[#allocation6 + $0x1c8] sm:$0xff]
    %v682 = vld [vmem:[#allocation6 + $0x1d0] sm:$0xff]
    %v683 = vld [vmem:[#allocation6 + $0x1d8] sm:$0xff]
    %v684 = vld [vmem:[#allocation6 + $0x1e0] sm:$0xff]
    %v685 = vld [vmem:[#allocation6 + $0x1e8] sm:$0xff]
    %v686 = vld [vmem:[#allocation6 + $0x1f0] sm:$0xff]
    %v687 = vld [vmem:[#allocation6 + $0x1f8] sm:$0xff]
    %688 = vmatpush.msra.mxu0 %v684
    %689 = vmatpush.msra.mxu0 %v680
    %690 = vmatpush.msra.mxu0 %v676
    %691 = vmatpush.msra.mxu0 %v672
    %692 = vmatpush.msra.mxu0 %v668
    %693 = vmatpush.msra.mxu0 %v664
    %694 = vmatpush.msra.mxu0 %v660
    %695 = vmatpush.msra.mxu0 %v656
    %696 = vmatpush.msra.mxu0 %v652
    %697 = vmatpush.msra.mxu0 %v648
    %698 = vmatpush.msra.mxu0 %v644
    %699 = vmatpush.msra.mxu0 %v640
    %700 = vmatpush.msra.mxu0 %v636
    %701 = vmatpush.msra.mxu0 %v632
    %702 = vmatpush.msra.mxu0 %v628
    %703 = vmatpush.msra.mxu0 %v624
    %704 = vmatmul.f32.gmra.mxu0 %v615
    %v705 = vpop.f32.mrf.mxu0
    %v706 = vadd.f32 0.0, %v705
    %707 = vdwg.mxu0
    %708 = vmatpush.msra.mxu0 %v685
    %709 = vmatpush.msra.mxu0 %v681
    %710 = vmatpush.msra.mxu0 %v677
    %711 = vmatpush.msra.mxu0 %v673
    %712 = vmatpush.msra.mxu0 %v669
    %713 = vmatpush.msra.mxu0 %v665
    %714 = vmatpush.msra.mxu0 %v661
    %715 = vmatpush.msra.mxu0 %v657
    %716 = vmatpush.msra.mxu0 %v653
    %717 = vmatpush.msra.mxu0 %v649
    %718 = vmatpush.msra.mxu0 %v645
    %719 = vmatpush.msra.mxu0 %v641
    %720 = vmatpush.msra.mxu0 %v637
    %721 = vmatpush.msra.mxu0 %v633
    %722 = vmatpush.msra.mxu0 %v629
    %723 = vmatpush.msra.mxu0 %v625
    %724 = vmatmul.f32.gmra.mxu0 %v615
    %v725 = vpop.f32.mrf.mxu0
    %v726 = vadd.f32 0.0, %v725
    %727 = vdwg.mxu0
    %728 = vmatpush.msra.mxu0 %v686
    %729 = vmatpush.msra.mxu0 %v682
    %730 = vmatpush.msra.mxu0 %v678
    %731 = vmatpush.msra.mxu0 %v674
    %732 = vmatpush.msra.mxu0 %v670
    %733 = vmatpush.msra.mxu0 %v666
    %734 = vmatpush.msra.mxu0 %v662
    %735 = vmatpush.msra.mxu0 %v658
    %736 = vmatpush.msra.mxu0 %v654
    %737 = vmatpush.msra.mxu0 %v650
    %738 = vmatpush.msra.mxu0 %v646
    %739 = vmatpush.msra.mxu0 %v642
    %740 = vmatpush.msra.mxu0 %v638
    %741 = vmatpush.msra.mxu0 %v634
    %742 = vmatpush.msra.mxu0 %v630
    %743 = vmatpush.msra.mxu0 %v626
    %744 = vmatmul.f32.gmra.mxu0 %v615
    %v745 = vpop.f32.mrf.mxu0
    %v746 = vadd.f32 0.0, %v745
    %747 = vdwg.mxu0
    %748 = vmatpush.msra.mxu0 %v687
    %749 = vmatpush.msra.mxu0 %v683
    %750 = vmatpush.msra.mxu0 %v679
    %751 = vmatpush.msra.mxu0 %v675
    %752 = vmatpush.msra.mxu0 %v671
    %753 = vmatpush.msra.mxu0 %v667
    %754 = vmatpush.msra.mxu0 %v663
    %755 = vmatpush.msra.mxu0 %v659
    %756 = vmatpush.msra.mxu0 %v655
    %757 = vmatpush.msra.mxu0 %v651
    %758 = vmatpush.msra.mxu0 %v647
    %759 = vmatpush.msra.mxu0 %v643
    %760 = vmatpush.msra.mxu0 %v639
    %761 = vmatpush.msra.mxu0 %v635
    %762 = vmatpush.msra.mxu0 %v631
    %763 = vmatpush.msra.mxu0 %v627
    %764 = vmatmul.f32.gmra.mxu0 %v615
    %v765 = vpop.f32.mrf.mxu0
    %v766 = vadd.f32 0.0, %v765
    %767 = vdwg.mxu0
    %v768 = vadd.f32 %v620, %v706
    %v769 = vadd.f32 %v621, %v726
    %v770 = vadd.f32 %v622, %v746
    %v771 = vadd.f32 %v623, %v766
    %v772 = vxor.u32 %v768, 2147483648
    %v773 = vmul.f32 %v772, 1.442695
    %v774 = vpow.pop %v773
    %v775 = vadd.f32 %v774, 1.0
    %v776 = vrcp.pop %v775
    %v777 = vmul.f32 %v775, %v776
    %v778 = vsub.f32 1.0, %v777
    %v779 = vmul.f32 %v776, %v778
    %v780 = vadd.f32 %v776, %v779
    %vm781 = vweird.f32 %v775
    %vm782 = vweird.f32 %v776
    %vm783 = vmor %vm781, %vm782
    %v784 = vsel %vm783, %v776, %v780
    %v785 = vand.u32 2147483647, %v775
    %vm786 = vcmp.eq.f32.partialorder %v785, 8.507059e+37
    %v787 = vand.u32 %v775, 2147483648
    %v788 = vor.u32 1.1754944e-38, %v787
    %v789 = vsel %vm786, %v788, %v784
    %v790 = vmul.f32 1.0, %v789
    %v791 = vxor.u32 %v769, 2147483648
    %v792 = vmul.f32 %v791, 1.442695
    %v793 = vpow.pop %v792
    %v794 = vadd.f32 %v793, 1.0
    %v795 = vrcp.pop %v794
    %v796 = vmul.f32 %v794, %v795
    %v797 = vsub.f32 1.0, %v796
    %v798 = vmul.f32 %v795, %v797
    %v799 = vadd.f32 %v795, %v798
    %vm800 = vweird.f32 %v794
    %vm801 = vweird.f32 %v795
    %vm802 = vmor %vm800, %vm801
    %v803 = vsel %vm802, %v795, %v799
    %v804 = vand.u32 2147483647, %v794
    %vm805 = vcmp.eq.f32.partialorder %v804, 8.507059e+37
    %v806 = vand.u32 %v794, 2147483648
    %v807 = vor.u32 1.1754944e-38, %v806
    %v808 = vsel %vm805, %v807, %v803
    %v809 = vmul.f32 1.0, %v808
    %v810 = vtanh.pop %v770
    %v811 = vxor.u32 %v771, 2147483648
    %v812 = vmul.f32 %v811, 1.442695
    %v813 = vpow.pop %v812
    %v814 = vadd.f32 %v813, 1.0
    %v815 = vrcp.pop %v814
    %v816 = vmul.f32 %v814, %v815
    %v817 = vsub.f32 1.0, %v816
    %v818 = vmul.f32 %v815, %v817
    %v819 = vadd.f32 %v815, %v818
    %vm820 = vweird.f32 %v814
    %vm821 = vweird.f32 %v815
    %vm822 = vmor %vm820, %vm821
    %v823 = vsel %vm822, %v815, %v819
    %v824 = vand.u32 2147483647, %v814
    %vm825 = vcmp.eq.f32.partialorder %v824, 8.507059e+37
    %v826 = vand.u32 %v814, 2147483648
    %v827 = vor.u32 1.1754944e-38, %v826
    %v828 = vsel %vm825, %v827, %v823
    %v829 = vmul.f32 1.0, %v828
    %v830 = vmul.f32 %v809, %v613
    %v831 = vmul.f32 %v790, %v810
    %v832 = vadd.f32 %v830, %v831
    %v833 = vtanh.pop %v832
    %v834 = vmul.f32 %v829, %v833
    %s835 = scalar_lea.vmem [#allocation3], 8
    %836 = vst [vmem:[%s835] sm:$0xff] %v834
    %s837 = smul.u32 2, 4
    %s838 = smul.addr %s837, 8
    %s839 = scalar_lea.vmem [#allocation2], %s838
    %v840 = vld [vmem:[%s839] sm:$0xff]
    %v841 = vld [vmem:[%s839 + $0x8] sm:$0xff]
    %v842 = vld [vmem:[%s839 + $0x10] sm:$0xff]
    %v843 = vld [vmem:[%s839 + $0x18] sm:$0xff]
    %v844 = vld [vmem:[#allocation6] sm:$0xff]
    %v845 = vld [vmem:[#allocation6 + $0x8] sm:$0xff]
    %v846 = vld [vmem:[#allocation6 + $0x10] sm:$0xff]
    %v847 = vld [vmem:[#allocation6 + $0x18] sm:$0xff]
    %v848 = vld [vmem:[#allocation6 + $0x20] sm:$0xff]
    %v849 = vld [vmem:[#allocation6 + $0x28] sm:$0xff]
    %v850 = vld [vmem:[#allocation6 + $0x30] sm:$0xff]
    %v851 = vld [vmem:[#allocation6 + $0x38] sm:$0xff]
    %v852 = vld [vmem:[#allocation6 + $0x40] sm:$0xff]
    %v853 = vld [vmem:[#allocation6 + $0x48] sm:$0xff]
    %v854 = vld [vmem:[#allocation6 + $0x50] sm:$0xff]
    %v855 = vld [vmem:[#allocation6 + $0x58] sm:$0xff]
    %v856 = vld [vmem:[#allocation6 + $0x60] sm:$0xff]
    %v857 = vld [vmem:[#allocation6 + $0x68] sm:$0xff]
    %v858 = vld [vmem:[#allocation6 + $0x70] sm:$0xff]
    %v859 = vld [vmem:[#allocation6 + $0x78] sm:$0xff]
    %v860 = vld [vmem:[#allocation6 + $0x80] sm:$0xff]
    %v861 = vld [vmem:[#allocation6 + $0x88] sm:$0xff]
    %v862 = vld [vmem:[#allocation6 + $0x90] sm:$0xff]
    %v863 = vld [vmem:[#allocation6 + $0x98] sm:$0xff]
    %v864 = vld [vmem:[#allocation6 + $0xa0] sm:$0xff]
    %v865 = vld [vmem:[#allocation6 + $0xa8] sm:$0xff]
    %v866 = vld [vmem:[#allocation6 + $0xb0] sm:$0xff]
    %v867 = vld [vmem:[#allocation6 + $0xb8] sm:$0xff]
    %v868 = vld [vmem:[#allocation6 + $0xc0] sm:$0xff]
    %v869 = vld [vmem:[#allocation6 + $0xc8] sm:$0xff]
    %v870 = vld [vmem:[#allocation6 + $0xd0] sm:$0xff]
    %v871 = vld [vmem:[#allocation6 + $0xd8] sm:$0xff]
    %v872 = vld [vmem:[#allocation6 + $0xe0] sm:$0xff]
    %v873 = vld [vmem:[#allocation6 + $0xe8] sm:$0xff]
    %v874 = vld [vmem:[#allocation6 + $0xf0] sm:$0xff]
    %v875 = vld [vmem:[#allocation6 + $0xf8] sm:$0xff]
    %v876 = vld [vmem:[#allocation6 + $0x100] sm:$0xff]
    %v877 = vld [vmem:[#allocation6 + $0x108] sm:$0xff]
    %v878 = vld [vmem:[#allocation6 + $0x110] sm:$0xff]
    %v879 = vld [vmem:[#allocation6 + $0x118] sm:$0xff]
    %v880 = vld [vmem:[#allocation6 + $0x120] sm:$0xff]
    %v881 = vld [vmem:[#allocation6 + $0x128] sm:$0xff]
    %v882 = vld [vmem:[#allocation6 + $0x130] sm:$0xff]
    %v883 = vld [vmem:[#allocation6 + $0x138] sm:$0xff]
    %v884 = vld [vmem:[#allocation6 + $0x140] sm:$0xff]
    %v885 = vld [vmem:[#allocation6 + $0x148] sm:$0xff]
    %v886 = vld [vmem:[#allocation6 + $0x150] sm:$0xff]
    %v887 = vld [vmem:[#allocation6 + $0x158] sm:$0xff]
    %v888 = vld [vmem:[#allocation6 + $0x160] sm:$0xff]
    %v889 = vld [vmem:[#allocation6 + $0x168] sm:$0xff]
    %v890 = vld [vmem:[#allocation6 + $0x170] sm:$0xff]
    %v891 = vld [vmem:[#allocation6 + $0x178] sm:$0xff]
    %v892 = vld [vmem:[#allocation6 + $0x180] sm:$0xff]
    %v893 = vld [vmem:[#allocation6 + $0x188] sm:$0xff]
    %v894 = vld [vmem:[#allocation6 + $0x190] sm:$0xff]
    %v895 = vld [vmem:[#allocation6 + $0x198] sm:$0xff]
    %v896 = vld [vmem:[#allocation6 + $0x1a0] sm:$0xff]
    %v897 = vld [vmem:[#allocation6 + $0x1a8] sm:$0xff]
    %v898 = vld [vmem:[#allocation6 + $0x1b0] sm:$0xff]
    %v899 = vld [vmem:[#allocation6 + $0x1b8] sm:$0xff]
    %v900 = vld [vmem:[#allocation6 + $0x1c0] sm:$0xff]
    %v901 = vld [vmem:[#allocation6 + $0x1c8] sm:$0xff]
    %v902 = vld [vmem:[#allocation6 + $0x1d0] sm:$0xff]
    %v903 = vld [vmem:[#allocation6 + $0x1d8] sm:$0xff]
    %v904 = vld [vmem:[#allocation6 + $0x1e0] sm:$0xff]
    %v905 = vld [vmem:[#allocation6 + $0x1e8] sm:$0xff]
    %v906 = vld [vmem:[#allocation6 + $0x1f0] sm:$0xff]
    %v907 = vld [vmem:[#allocation6 + $0x1f8] sm:$0xff]
    %908 = vmatpush.msra.mxu0 %v904
    %909 = vmatpush.msra.mxu0 %v900
    %910 = vmatpush.msra.mxu0 %v896
    %911 = vmatpush.msra.mxu0 %v892
    %912 = vmatpush.msra.mxu0 %v888
    %913 = vmatpush.msra.mxu0 %v884
    %914 = vmatpush.msra.mxu0 %v880
    %915 = vmatpush.msra.mxu0 %v876
    %916 = vmatpush.msra.mxu0 %v872
    %917 = vmatpush.msra.mxu0 %v868
    %918 = vmatpush.msra.mxu0 %v864
    %919 = vmatpush.msra.mxu0 %v860
    %920 = vmatpush.msra.mxu0 %v856
    %921 = vmatpush.msra.mxu0 %v852
    %922 = vmatpush.msra.mxu0 %v848
    %923 = vmatpush.msra.mxu0 %v844
    %924 = vmatmul.f32.gmra.mxu0 %v834
    %v925 = vpop.f32.mrf.mxu0
    %v926 = vadd.f32 0.0, %v925
    %927 = vdwg.mxu0
    %928 = vmatpush.msra.mxu0 %v905
    %929 = vmatpush.msra.mxu0 %v901
    %930 = vmatpush.msra.mxu0 %v897
    %931 = vmatpush.msra.mxu0 %v893
    %932 = vmatpush.msra.mxu0 %v889
    %933 = vmatpush.msra.mxu0 %v885
    %934 = vmatpush.msra.mxu0 %v881
    %935 = vmatpush.msra.mxu0 %v877
    %936 = vmatpush.msra.mxu0 %v873
    %937 = vmatpush.msra.mxu0 %v869
    %938 = vmatpush.msra.mxu0 %v865
    %939 = vmatpush.msra.mxu0 %v861
    %940 = vmatpush.msra.mxu0 %v857
    %941 = vmatpush.msra.mxu0 %v853
    %942 = vmatpush.msra.mxu0 %v849
    %943 = vmatpush.msra.mxu0 %v845
    %944 = vmatmul.f32.gmra.mxu0 %v834
    %v945 = vpop.f32.mrf.mxu0
    %v946 = vadd.f32 0.0, %v945
    %947 = vdwg.mxu0
    %948 = vmatpush.msra.mxu0 %v906
    %949 = vmatpush.msra.mxu0 %v902
    %950 = vmatpush.msra.mxu0 %v898
    %951 = vmatpush.msra.mxu0 %v894
    %952 = vmatpush.msra.mxu0 %v890
    %953 = vmatpush.msra.mxu0 %v886
    %954 = vmatpush.msra.mxu0 %v882
    %955 = vmatpush.msra.mxu0 %v878
    %956 = vmatpush.msra.mxu0 %v874
    %957 = vmatpush.msra.mxu0 %v870
    %958 = vmatpush.msra.mxu0 %v866
    %959 = vmatpush.msra.mxu0 %v862
    %960 = vmatpush.msra.mxu0 %v858
    %961 = vmatpush.msra.mxu0 %v854
    %962 = vmatpush.msra.mxu0 %v850
    %963 = vmatpush.msra.mxu0 %v846
    %964 = vmatmul.f32.gmra.mxu0 %v834
    %v965 = vpop.f32.mrf.mxu0
    %v966 = vadd.f32 0.0, %v965
    %967 = vdwg.mxu0
    %968 = vmatpush.msra.mxu0 %v907
    %969 = vmatpush.msra.mxu0 %v903
    %970 = vmatpush.msra.mxu0 %v899
    %971 = vmatpush.msra.mxu0 %v895
    %972 = vmatpush.msra.mxu0 %v891
    %973 = vmatpush.msra.mxu0 %v887
    %974 = vmatpush.msra.mxu0 %v883
    %975 = vmatpush.msra.mxu0 %v879
    %976 = vmatpush.msra.mxu0 %v875
    %977 = vmatpush.msra.mxu0 %v871
    %978 = vmatpush.msra.mxu0 %v867
    %979 = vmatpush.msra.mxu0 %v863
    %980 = vmatpush.msra.mxu0 %v859
    %981 = vmatpush.msra.mxu0 %v855
    %982 = vmatpush.msra.mxu0 %v851
    %983 = vmatpush.msra.mxu0 %v847
    %984 = vmatmul.f32.gmra.mxu0 %v834
    %v985 = vpop.f32.mrf.mxu0
    %v986 = vadd.f32 0.0, %v985
    %987 = vdwg.mxu0
    %v988 = vadd.f32 %v840, %v926
    %v989 = vadd.f32 %v841, %v946
    %v990 = vadd.f32 %v842, %v966
    %v991 = vadd.f32 %v843, %v986
    %v992 = vxor.u32 %v988, 2147483648
    %v993 = vmul.f32 %v992, 1.442695
    %v994 = vpow.pop %v993
    %v995 = vadd.f32 %v994, 1.0
    %v996 = vrcp.pop %v995
    %v997 = vmul.f32 %v995, %v996
    %v998 = vsub.f32 1.0, %v997
    %v999 = vmul.f32 %v996, %v998
    %v1000 = vadd.f32 %v996, %v999
    %vm1001 = vweird.f32 %v995
    %vm1002 = vweird.f32 %v996
    %vm1003 = vmor %vm1001, %vm1002
    %v1004 = vsel %vm1003, %v996, %v1000
    %v1005 = vand.u32 2147483647, %v995
    %vm1006 = vcmp.eq.f32.partialorder %v1005, 8.507059e+37
    %v1007 = vand.u32 %v995, 2147483648
    %v1008 = vor.u32 1.1754944e-38, %v1007
    %v1009 = vsel %vm1006, %v1008, %v1004
    %v1010 = vmul.f32 1.0, %v1009
    %v1011 = vxor.u32 %v989, 2147483648
    %v1012 = vmul.f32 %v1011, 1.442695
    %v1013 = vpow.pop %v1012
    %v1014 = vadd.f32 %v1013, 1.0
    %v1015 = vrcp.pop %v1014
    %v1016 = vmul.f32 %v1014, %v1015
    %v1017 = vsub.f32 1.0, %v1016
    %v1018 = vmul.f32 %v1015, %v1017
    %v1019 = vadd.f32 %v1015, %v1018
    %vm1020 = vweird.f32 %v1014
    %vm1021 = vweird.f32 %v1015
    %vm1022 = vmor %vm1020, %vm1021
    %v1023 = vsel %vm1022, %v1015, %v1019
    %v1024 = vand.u32 2147483647, %v1014
    %vm1025 = vcmp.eq.f32.partialorder %v1024, 8.507059e+37
    %v1026 = vand.u32 %v1014, 2147483648
    %v1027 = vor.u32 1.1754944e-38, %v1026
    %v1028 = vsel %vm1025, %v1027, %v1023
    %v1029 = vmul.f32 1.0, %v1028
    %v1030 = vtanh.pop %v990
    %v1031 = vxor.u32 %v991, 2147483648
    %v1032 = vmul.f32 %v1031, 1.442695
    %v1033 = vpow.pop %v1032
    %v1034 = vadd.f32 %v1033, 1.0
    %v1035 = vrcp.pop %v1034
    %v1036 = vmul.f32 %v1034, %v1035
    %v1037 = vsub.f32 1.0, %v1036
    %v1038 = vmul.f32 %v1035, %v1037
    %v1039 = vadd.f32 %v1035, %v1038
    %vm1040 = vweird.f32 %v1034
    %vm1041 = vweird.f32 %v1035
    %vm1042 = vmor %vm1040, %vm1041
    %v1043 = vsel %vm1042, %v1035, %v1039
    %v1044 = vand.u32 2147483647, %v1034
    %vm1045 = vcmp.eq.f32.partialorder %v1044, 8.507059e+37
    %v1046 = vand.u32 %v1034, 2147483648
    %v1047 = vor.u32 1.1754944e-38, %v1046
    %v1048 = vsel %vm1045, %v1047, %v1043
    %v1049 = vmul.f32 1.0, %v1048
    %v1050 = vmul.f32 %v1029, %v832
    %v1051 = vmul.f32 %v1010, %v1030
    %v1052 = vadd.f32 %v1050, %v1051
    %v1053 = vtanh.pop %v1052
    %v1054 = vmul.f32 %v1049, %v1053
    %s1055 = scalar_lea.vmem [#allocation3], 16
    %1056 = vst [vmem:[%s1055] sm:$0xff] %v1054
    %s1057 = smul.u32 3, 4
    %s1058 = smul.addr %s1057, 8
    %s1059 = scalar_lea.vmem [#allocation2], %s1058
    %v1060 = vld [vmem:[%s1059] sm:$0xff]
    %v1061 = vld [vmem:[%s1059 + $0x8] sm:$0xff]
    %v1062 = vld [vmem:[%s1059 + $0x10] sm:$0xff]
    %v1063 = vld [vmem:[%s1059 + $0x18] sm:$0xff]
    %v1064 = vld [vmem:[#allocation6] sm:$0xff]
    %v1065 = vld [vmem:[#allocation6 + $0x8] sm:$0xff]
    %v1066 = vld [vmem:[#allocation6 + $0x10] sm:$0xff]
    %v1067 = vld [vmem:[#allocation6 + $0x18] sm:$0xff]
    %v1068 = vld [vmem:[#allocation6 + $0x20] sm:$0xff]
    %v1069 = vld [vmem:[#allocation6 + $0x28] sm:$0xff]
    %v1070 = vld [vmem:[#allocation6 + $0x30] sm:$0xff]
    %v1071 = vld [vmem:[#allocation6 + $0x38] sm:$0xff]
    %v1072 = vld [vmem:[#allocation6 + $0x40] sm:$0xff]
    %v1073 = vld [vmem:[#allocation6 + $0x48] sm:$0xff]
    %v1074 = vld [vmem:[#allocation6 + $0x50] sm:$0xff]
    %v1075 = vld [vmem:[#allocation6 + $0x58] sm:$0xff]
    %v1076 = vld [vmem:[#allocation6 + $0x60] sm:$0xff]
    %v1077 = vld [vmem:[#allocation6 + $0x68] sm:$0xff]
    %v1078 = vld [vmem:[#allocation6 + $0x70] sm:$0xff]
    %v1079 = vld [vmem:[#allocation6 + $0x78] sm:$0xff]
    %v1080 = vld [vmem:[#allocation6 + $0x80] sm:$0xff]
    %v1081 = vld [vmem:[#allocation6 + $0x88] sm:$0xff]
    %v1082 = vld [vmem:[#allocation6 + $0x90] sm:$0xff]
    %v1083 = vld [vmem:[#allocation6 + $0x98] sm:$0xff]
    %v1084 = vld [vmem:[#allocation6 + $0xa0] sm:$0xff]
    %v1085 = vld [vmem:[#allocation6 + $0xa8] sm:$0xff]
    %v1086 = vld [vmem:[#allocation6 + $0xb0] sm:$0xff]
    %v1087 = vld [vmem:[#allocation6 + $0xb8] sm:$0xff]
    %v1088 = vld [vmem:[#allocation6 + $0xc0] sm:$0xff]
    %v1089 = vld [vmem:[#allocation6 + $0xc8] sm:$0xff]
    %v1090 = vld [vmem:[#allocation6 + $0xd0] sm:$0xff]
    %v1091 = vld [vmem:[#allocation6 + $0xd8] sm:$0xff]
    %v1092 = vld [vmem:[#allocation6 + $0xe0] sm:$0xff]
    %v1093 = vld [vmem:[#allocation6 + $0xe8] sm:$0xff]
    %v1094 = vld [vmem:[#allocation6 + $0xf0] sm:$0xff]
    %v1095 = vld [vmem:[#allocation6 + $0xf8] sm:$0xff]
    %v1096 = vld [vmem:[#allocation6 + $0x100] sm:$0xff]
    %v1097 = vld [vmem:[#allocation6 + $0x108] sm:$0xff]
    %v1098 = vld [vmem:[#allocation6 + $0x110] sm:$0xff]
    %v1099 = vld [vmem:[#allocation6 + $0x118] sm:$0xff]
    %v1100 = vld [vmem:[#allocation6 + $0x120] sm:$0xff]
    %v1101 = vld [vmem:[#allocation6 + $0x128] sm:$0xff]
    %v1102 = vld [vmem:[#allocation6 + $0x130] sm:$0xff]
    %v1103 = vld [vmem:[#allocation6 + $0x138] sm:$0xff]
    %v1104 = vld [vmem:[#allocation6 + $0x140] sm:$0xff]
    %v1105 = vld [vmem:[#allocation6 + $0x148] sm:$0xff]
    %v1106 = vld [vmem:[#allocation6 + $0x150] sm:$0xff]
    %v1107 = vld [vmem:[#allocation6 + $0x158] sm:$0xff]
    %v1108 = vld [vmem:[#allocation6 + $0x160] sm:$0xff]
    %v1109 = vld [vmem:[#allocation6 + $0x168] sm:$0xff]
    %v1110 = vld [vmem:[#allocation6 + $0x170] sm:$0xff]
    %v1111 = vld [vmem:[#allocation6 + $0x178] sm:$0xff]
    %v1112 = vld [vmem:[#allocation6 + $0x180] sm:$0xff]
    %v1113 = vld [vmem:[#allocation6 + $0x188] sm:$0xff]
    %v1114 = vld [vmem:[#allocation6 + $0x190] sm:$0xff]
    %v1115 = vld [vmem:[#allocation6 + $0x198] sm:$0xff]
    %v1116 = vld [vmem:[#allocation6 + $0x1a0] sm:$0xff]
    %v1117 = vld [vmem:[#allocation6 + $0x1a8] sm:$0xff]
    %v1118 = vld [vmem:[#allocation6 + $0x1b0] sm:$0xff]
    %v1119 = vld [vmem:[#allocation6 + $0x1b8] sm:$0xff]
    %v1120 = vld [vmem:[#allocation6 + $0x1c0] sm:$0xff]
    %v1121 = vld [vmem:[#allocation6 + $0x1c8] sm:$0xff]
    %v1122 = vld [vmem:[#allocation6 + $0x1d0] sm:$0xff]
    %v1123 = vld [vmem:[#allocation6 + $0x1d8] sm:$0xff]
    %v1124 = vld [vmem:[#allocation6 + $0x1e0] sm:$0xff]
    %v1125 = vld [vmem:[#allocation6 + $0x1e8] sm:$0xff]
    %v1126 = vld [vmem:[#allocation6 + $0x1f0] sm:$0xff]
    %v1127 = vld [vmem:[#allocation6 + $0x1f8] sm:$0xff]
    %1128 = vmatpush.msra.mxu0 %v1124
    %1129 = vmatpush.msra.mxu0 %v1120
    %1130 = vmatpush.msra.mxu0 %v1116
    %1131 = vmatpush.msra.mxu0 %v1112
    %1132 = vmatpush.msra.mxu0 %v1108
    %1133 = vmatpush.msra.mxu0 %v1104
    %1134 = vmatpush.msra.mxu0 %v1100
    %1135 = vmatpush.msra.mxu0 %v1096
    %1136 = vmatpush.msra.mxu0 %v1092
    %1137 = vmatpush.msra.mxu0 %v1088
    %1138 = vmatpush.msra.mxu0 %v1084
    %1139 = vmatpush.msra.mxu0 %v1080
    %1140 = vmatpush.msra.mxu0 %v1076
    %1141 = vmatpush.msra.mxu0 %v1072
    %1142 = vmatpush.msra.mxu0 %v1068
    %1143 = vmatpush.msra.mxu0 %v1064
    %1144 = vmatmul.f32.gmra.mxu0 %v1054
    %v1145 = vpop.f32.mrf.mxu0
    %v1146 = vadd.f32 0.0, %v1145
    %1147 = vdwg.mxu0
    %1148 = vmatpush.msra.mxu0 %v1125
    %1149 = vmatpush.msra.mxu0 %v1121
    %1150 = vmatpush.msra.mxu0 %v1117
    %1151 = vmatpush.msra.mxu0 %v1113
    %1152 = vmatpush.msra.mxu0 %v1109
    %1153 = vmatpush.msra.mxu0 %v1105
    %1154 = vmatpush.msra.mxu0 %v1101
    %1155 = vmatpush.msra.mxu0 %v1097
    %1156 = vmatpush.msra.mxu0 %v1093
    %1157 = vmatpush.msra.mxu0 %v1089
    %1158 = vmatpush.msra.mxu0 %v1085
    %1159 = vmatpush.msra.mxu0 %v1081
    %1160 = vmatpush.msra.mxu0 %v1077
    %1161 = vmatpush.msra.mxu0 %v1073
    %1162 = vmatpush.msra.mxu0 %v1069
    %1163 = vmatpush.msra.mxu0 %v1065
    %1164 = vmatmul.f32.gmra.mxu0 %v1054
    %v1165 = vpop.f32.mrf.mxu0
    %v1166 = vadd.f32 0.0, %v1165
    %1167 = vdwg.mxu0
    %1168 = vmatpush.msra.mxu0 %v1126
    %1169 = vmatpush.msra.mxu0 %v1122
    %1170 = vmatpush.msra.mxu0 %v1118
    %1171 = vmatpush.msra.mxu0 %v1114
    %1172 = vmatpush.msra.mxu0 %v1110
    %1173 = vmatpush.msra.mxu0 %v1106
    %1174 = vmatpush.msra.mxu0 %v1102
    %1175 = vmatpush.msra.mxu0 %v1098
    %1176 = vmatpush.msra.mxu0 %v1094
    %1177 = vmatpush.msra.mxu0 %v1090
    %1178 = vmatpush.msra.mxu0 %v1086
    %1179 = vmatpush.msra.mxu0 %v1082
    %1180 = vmatpush.msra.mxu0 %v1078
    %1181 = vmatpush.msra.mxu0 %v1074
    %1182 = vmatpush.msra.mxu0 %v1070
    %1183 = vmatpush.msra.mxu0 %v1066
    %1184 = vmatmul.f32.gmra.mxu0 %v1054
    %v1185 = vpop.f32.mrf.mxu0
    %v1186 = vadd.f32 0.0, %v1185
    %1187 = vdwg.mxu0
    %1188 = vmatpush.msra.mxu0 %v1127
    %1189 = vmatpush.msra.mxu0 %v1123
    %1190 = vmatpush.msra.mxu0 %v1119
    %1191 = vmatpush.msra.mxu0 %v1115
    %1192 = vmatpush.msra.mxu0 %v1111
    %1193 = vmatpush.msra.mxu0 %v1107
    %1194 = vmatpush.msra.mxu0 %v1103
    %1195 = vmatpush.msra.mxu0 %v1099
    %1196 = vmatpush.msra.mxu0 %v1095
    %1197 = vmatpush.msra.mxu0 %v1091
    %1198 = vmatpush.msra.mxu0 %v1087
    %1199 = vmatpush.msra.mxu0 %v1083
    %1200 = vmatpush.msra.mxu0 %v1079
    %1201 = vmatpush.msra.mxu0 %v1075
    %1202 = vmatpush.msra.mxu0 %v1071
    %1203 = vmatpush.msra.mxu0 %v1067
    %1204 = vmatmul.f32.gmra.mxu0 %v1054
    %v1205 = vpop.f32.mrf.mxu0
    %v1206 = vadd.f32 0.0, %v1205
    %1207 = vdwg.mxu0
    %v1208 = vadd.f32 %v1060, %v1146
    %v1209 = vadd.f32 %v1061, %v1166
    %v1210 = vadd.f32 %v1062, %v1186
    %v1211 = vadd.f32 %v1063, %v1206
    %v1212 = vxor.u32 %v1208, 2147483648
    %v1213 = vmul.f32 %v1212, 1.442695
    %v1214 = vpow.pop %v1213
    %v1215 = vadd.f32 %v1214, 1.0
    %v1216 = vrcp.pop %v1215
    %v1217 = vmul.f32 %v1215, %v1216
    %v1218 = vsub.f32 1.0, %v1217
    %v1219 = vmul.f32 %v1216, %v1218
    %v1220 = vadd.f32 %v1216, %v1219
    %vm1221 = vweird.f32 %v1215
    %vm1222 = vweird.f32 %v1216
    %vm1223 = vmor %vm1221, %vm1222
    %v1224 = vsel %vm1223, %v1216, %v1220
    %v1225 = vand.u32 2147483647, %v1215
    %vm1226 = vcmp.eq.f32.partialorder %v1225, 8.507059e+37
    %v1227 = vand.u32 %v1215, 2147483648
    %v1228 = vor.u32 1.1754944e-38, %v1227
    %v1229 = vsel %vm1226, %v1228, %v1224
    %v1230 = vmul.f32 1.0, %v1229
    %v1231 = vxor.u32 %v1209, 2147483648
    %v1232 = vmul.f32 %v1231, 1.442695
    %v1233 = vpow.pop %v1232
    %v1234 = vadd.f32 %v1233, 1.0
    %v1235 = vrcp.pop %v1234
    %v1236 = vmul.f32 %v1234, %v1235
    %v1237 = vsub.f32 1.0, %v1236
    %v1238 = vmul.f32 %v1235, %v1237
    %v1239 = vadd.f32 %v1235, %v1238
    %vm1240 = vweird.f32 %v1234
    %vm1241 = vweird.f32 %v1235
    %vm1242 = vmor %vm1240, %vm1241
    %v1243 = vsel %vm1242, %v1235, %v1239
    %v1244 = vand.u32 2147483647, %v1234
    %vm1245 = vcmp.eq.f32.partialorder %v1244, 8.507059e+37
    %v1246 = vand.u32 %v1234, 2147483648
    %v1247 = vor.u32 1.1754944e-38, %v1246
    %v1248 = vsel %vm1245, %v1247, %v1243
    %v1249 = vmul.f32 1.0, %v1248
    %v1250 = vtanh.pop %v1210
    %v1251 = vxor.u32 %v1211, 2147483648
    %v1252 = vmul.f32 %v1251, 1.442695
    %v1253 = vpow.pop %v1252
    %v1254 = vadd.f32 %v1253, 1.0
    %v1255 = vrcp.pop %v1254
    %v1256 = vmul.f32 %v1254, %v1255
    %v1257 = vsub.f32 1.0, %v1256
    %v1258 = vmul.f32 %v1255, %v1257
    %v1259 = vadd.f32 %v1255, %v1258
    %vm1260 = vweird.f32 %v1254
    %vm1261 = vweird.f32 %v1255
    %vm1262 = vmor %vm1260, %vm1261
    %v1263 = vsel %vm1262, %v1255, %v1259
    %v1264 = vand.u32 2147483647, %v1254
    %vm1265 = vcmp.eq.f32.partialorder %v1264, 8.507059e+37
    %v1266 = vand.u32 %v1254, 2147483648
    %v1267 = vor.u32 1.1754944e-38, %v1266
    %v1268 = vsel %vm1265, %v1267, %v1263
    %v1269 = vmul.f32 1.0, %v1268
    %v1270 = vmul.f32 %v1249, %v1052
    %v1271 = vmul.f32 %v1230, %v1250
    %v1272 = vadd.f32 %v1270, %v1271
    %v1273 = vtanh.pop %v1272
    %v1274 = vmul.f32 %v1269, %v1273
    %s1275 = scalar_lea.vmem [#allocation3], 24
    %1276 = vst [vmem:[%s1275] sm:$0xff] %v1274
    %s1277 = smul.u32 4, 4
    %s1278 = smul.addr %s1277, 8
    %s1279 = scalar_lea.vmem [#allocation2], %s1278
    %v1280 = vld [vmem:[%s1279] sm:$0xff]
    %v1281 = vld [vmem:[%s1279 + $0x8] sm:$0xff]
    %v1282 = vld [vmem:[%s1279 + $0x10] sm:$0xff]
    %v1283 = vld [vmem:[%s1279 + $0x18] sm:$0xff]
    %v1284 = vld [vmem:[#allocation6] sm:$0xff]
    %v1285 = vld [vmem:[#allocation6 + $0x8] sm:$0xff]
    %v1286 = vld [vmem:[#allocation6 + $0x10] sm:$0xff]
    %v1287 = vld [vmem:[#allocation6 + $0x18] sm:$0xff]
    %v1288 = vld [vmem:[#allocation6 + $0x20] sm:$0xff]
    %v1289 = vld [vmem:[#allocation6 + $0x28] sm:$0xff]
    %v1290 = vld [vmem:[#allocation6 + $0x30] sm:$0xff]
    %v1291 = vld [vmem:[#allocation6 + $0x38] sm:$0xff]
    %v1292 = vld [vmem:[#allocation6 + $0x40] sm:$0xff]
    %v1293 = vld [vmem:[#allocation6 + $0x48] sm:$0xff]
    %v1294 = vld [vmem:[#allocation6 + $0x50] sm:$0xff]
    %v1295 = vld [vmem:[#allocation6 + $0x58] sm:$0xff]
    %v1296 = vld [vmem:[#allocation6 + $0x60] sm:$0xff]
    %v1297 = vld [vmem:[#allocation6 + $0x68] sm:$0xff]
    %v1298 = vld [vmem:[#allocation6 + $0x70] sm:$0xff]
    %v1299 = vld [vmem:[#allocation6 + $0x78] sm:$0xff]
    %v1300 = vld [vmem:[#allocation6 + $0x80] sm:$0xff]
    %v1301 = vld [vmem:[#allocation6 + $0x88] sm:$0xff]
    %v1302 = vld [vmem:[#allocation6 + $0x90] sm:$0xff]
    %v1303 = vld [vmem:[#allocation6 + $0x98] sm:$0xff]
    %v1304 = vld [vmem:[#allocation6 + $0xa0] sm:$0xff]
    %v1305 = vld [vmem:[#allocation6 + $0xa8] sm:$0xff]
    %v1306 = vld [vmem:[#allocation6 + $0xb0] sm:$0xff]
    %v1307 = vld [vmem:[#allocation6 + $0xb8] sm:$0xff]
    %v1308 = vld [vmem:[#allocation6 + $0xc0] sm:$0xff]
    %v1309 = vld [vmem:[#allocation6 + $0xc8] sm:$0xff]
    %v1310 = vld [vmem:[#allocation6 + $0xd0] sm:$0xff]
    %v1311 = vld [vmem:[#allocation6 + $0xd8] sm:$0xff]
    %v1312 = vld [vmem:[#allocation6 + $0xe0] sm:$0xff]
    %v1313 = vld [vmem:[#allocation6 + $0xe8] sm:$0xff]
    %v1314 = vld [vmem:[#allocation6 + $0xf0] sm:$0xff]
    %v1315 = vld [vmem:[#allocation6 + $0xf8] sm:$0xff]
    %v1316 = vld [vmem:[#allocation6 + $0x100] sm:$0xff]
    %v1317 = vld [vmem:[#allocation6 + $0x108] sm:$0xff]
    %v1318 = vld [vmem:[#allocation6 + $0x110] sm:$0xff]
    %v1319 = vld [vmem:[#allocation6 + $0x118] sm:$0xff]
    %v1320 = vld [vmem:[#allocation6 + $0x120] sm:$0xff]
    %v1321 = vld [vmem:[#allocation6 + $0x128] sm:$0xff]
    %v1322 = vld [vmem:[#allocation6 + $0x130] sm:$0xff]
    %v1323 = vld [vmem:[#allocation6 + $0x138] sm:$0xff]
    %v1324 = vld [vmem:[#allocation6 + $0x140] sm:$0xff]
    %v1325 = vld [vmem:[#allocation6 + $0x148] sm:$0xff]
    %v1326 = vld [vmem:[#allocation6 + $0x150] sm:$0xff]
    %v1327 = vld [vmem:[#allocation6 + $0x158] sm:$0xff]
    %v1328 = vld [vmem:[#allocation6 + $0x160] sm:$0xff]
    %v1329 = vld [vmem:[#allocation6 + $0x168] sm:$0xff]
    %v1330 = vld [vmem:[#allocation6 + $0x170] sm:$0xff]
    %v1331 = vld [vmem:[#allocation6 + $0x178] sm:$0xff]
    %v1332 = vld [vmem:[#allocation6 + $0x180] sm:$0xff]
    %v1333 = vld [vmem:[#allocation6 + $0x188] sm:$0xff]
    %v1334 = vld [vmem:[#allocation6 + $0x190] sm:$0xff]
    %v1335 = vld [vmem:[#allocation6 + $0x198] sm:$0xff]
    %v1336 = vld [vmem:[#allocation6 + $0x1a0] sm:$0xff]
    %v1337 = vld [vmem:[#allocation6 + $0x1a8] sm:$0xff]
    %v1338 = vld [vmem:[#allocation6 + $0x1b0] sm:$0xff]
    %v1339 = vld [vmem:[#allocation6 + $0x1b8] sm:$0xff]
    %v1340 = vld [vmem:[#allocation6 + $0x1c0] sm:$0xff]
    %v1341 = vld [vmem:[#allocation6 + $0x1c8] sm:$0xff]
    %v1342 = vld [vmem:[#allocation6 + $0x1d0] sm:$0xff]
    %v1343 = vld [vmem:[#allocation6 + $0x1d8] sm:$0xff]
    %v1344 = vld [vmem:[#allocation6 + $0x1e0] sm:$0xff]
    %v1345 = vld [vmem:[#allocation6 + $0x1e8] sm:$0xff]
    %v1346 = vld [vmem:[#allocation6 + $0x1f0] sm:$0xff]
    %v1347 = vld [vmem:[#allocation6 + $0x1f8] sm:$0xff]
    %1348 = vmatpush.msra.mxu0 %v1344
    %1349 = vmatpush.msra.mxu0 %v1340
    %1350 = vmatpush.msra.mxu0 %v1336
    %1351 = vmatpush.msra.mxu0 %v1332
    %1352 = vmatpush.msra.mxu0 %v1328
    %1353 = vmatpush.msra.mxu0 %v1324
    %1354 = vmatpush.msra.mxu0 %v1320
    %1355 = vmatpush.msra.mxu0 %v1316
    %1356 = vmatpush.msra.mxu0 %v1312
    %1357 = vmatpush.msra.mxu0 %v1308
    %1358 = vmatpush.msra.mxu0 %v1304
    %1359 = vmatpush.msra.mxu0 %v1300
    %1360 = vmatpush.msra.mxu0 %v1296
    %1361 = vmatpush.msra.mxu0 %v1292
    %1362 = vmatpush.msra.mxu0 %v1288
    %1363 = vmatpush.msra.mxu0 %v1284
    %1364 = vmatmul.f32.gmra.mxu0 %v1274
    %v1365 = vpop.f32.mrf.mxu0
    %v1366 = vadd.f32 0.0, %v1365
    %1367 = vdwg.mxu0
    %1368 = vmatpush.msra.mxu0 %v1345
    %1369 = vmatpush.msra.mxu0 %v1341
    %1370 = vmatpush.msra.mxu0 %v1337
    %1371 = vmatpush.msra.mxu0 %v1333
    %1372 = vmatpush.msra.mxu0 %v1329
    %1373 = vmatpush.msra.mxu0 %v1325
    %1374 = vmatpush.msra.mxu0 %v1321
    %1375 = vmatpush.msra.mxu0 %v1317
    %1376 = vmatpush.msra.mxu0 %v1313
    %1377 = vmatpush.msra.mxu0 %v1309
    %1378 = vmatpush.msra.mxu0 %v1305
    %1379 = vmatpush.msra.mxu0 %v1301
    %1380 = vmatpush.msra.mxu0 %v1297
    %1381 = vmatpush.msra.mxu0 %v1293
    %1382 = vmatpush.msra.mxu0 %v1289
    %1383 = vmatpush.msra.mxu0 %v1285
    %1384 = vmatmul.f32.gmra.mxu0 %v1274
    %v1385 = vpop.f32.mrf.mxu0
    %v1386 = vadd.f32 0.0, %v1385
    %1387 = vdwg.mxu0
    %1388 = vmatpush.msra.mxu0 %v1346
    %1389 = vmatpush.msra.mxu0 %v1342
    %1390 = vmatpush.msra.mxu0 %v1338
    %1391 = vmatpush.msra.mxu0 %v1334
    %1392 = vmatpush.msra.mxu0 %v1330
    %1393 = vmatpush.msra.mxu0 %v1326
    %1394 = vmatpush.msra.mxu0 %v1322
    %1395 = vmatpush.msra.mxu0 %v1318
    %1396 = vmatpush.msra.mxu0 %v1314
    %1397 = vmatpush.msra.mxu0 %v1310
    %1398 = vmatpush.msra.mxu0 %v1306
    %1399 = vmatpush.msra.mxu0 %v1302
    %1400 = vmatpush.msra.mxu0 %v1298
    %1401 = vmatpush.msra.mxu0 %v1294
    %1402 = vmatpush.msra.mxu0 %v1290
    %1403 = vmatpush.msra.mxu0 %v1286
    %1404 = vmatmul.f32.gmra.mxu0 %v1274
    %v1405 = vpop.f32.mrf.mxu0
    %v1406 = vadd.f32 0.0, %v1405
    %1407 = vdwg.mxu0
    %1408 = vmatpush.msra.mxu0 %v1347
    %1409 = vmatpush.msra.mxu0 %v1343
    %1410 = vmatpush.msra.mxu0 %v1339
    %1411 = vmatpush.msra.mxu0 %v1335
    %1412 = vmatpush.msra.mxu0 %v1331
    %1413 = vmatpush.msra.mxu0 %v1327
    %1414 = vmatpush.msra.mxu0 %v1323
    %1415 = vmatpush.msra.mxu0 %v1319
    %1416 = vmatpush.msra.mxu0 %v1315
    %1417 = vmatpush.msra.mxu0 %v1311
    %1418 = vmatpush.msra.mxu0 %v1307
    %1419 = vmatpush.msra.mxu0 %v1303
    %1420 = vmatpush.msra.mxu0 %v1299
    %1421 = vmatpush.msra.mxu0 %v1295
    %1422 = vmatpush.msra.mxu0 %v1291
    %1423 = vmatpush.msra.mxu0 %v1287
    %1424 = vmatmul.f32.gmra.mxu0 %v1274
    %v1425 = vpop.f32.mrf.mxu0
    %v1426 = vadd.f32 0.0, %v1425
    %1427 = vdwg.mxu0
    %v1428 = vadd.f32 %v1280, %v1366
    %v1429 = vadd.f32 %v1281, %v1386
    %v1430 = vadd.f32 %v1282, %v1406
    %v1431 = vadd.f32 %v1283, %v1426
    %v1432 = vxor.u32 %v1428, 2147483648
    %v1433 = vmul.f32 %v1432, 1.442695
    %v1434 = vpow.pop %v1433
    %v1435 = vadd.f32 %v1434, 1.0
    %v1436 = vrcp.pop %v1435
    %v1437 = vmul.f32 %v1435, %v1436
    %v1438 = vsub.f32 1.0, %v1437
    %v1439 = vmul.f32 %v1436, %v1438
    %v1440 = vadd.f32 %v1436, %v1439
    %vm1441 = vweird.f32 %v1435
    %vm1442 = vweird.f32 %v1436
    %vm1443 = vmor %vm1441, %vm1442
    %v1444 = vsel %vm1443, %v1436, %v1440
    %v1445 = vand.u32 2147483647, %v1435
    %vm1446 = vcmp.eq.f32.partialorder %v1445, 8.507059e+37
    %v1447 = vand.u32 %v1435, 2147483648
    %v1448 = vor.u32 1.1754944e-38, %v1447
    %v1449 = vsel %vm1446, %v1448, %v1444
    %v1450 = vmul.f32 1.0, %v1449
    %v1451 = vxor.u32 %v1429, 2147483648
    %v1452 = vmul.f32 %v1451, 1.442695
    %v1453 = vpow.pop %v1452
    %v1454 = vadd.f32 %v1453, 1.0
    %v1455 = vrcp.pop %v1454
    %v1456 = vmul.f32 %v1454, %v1455
    %v1457 = vsub.f32 1.0, %v1456
    %v1458 = vmul.f32 %v1455, %v1457
    %v1459 = vadd.f32 %v1455, %v1458
    %vm1460 = vweird.f32 %v1454
    %vm1461 = vweird.f32 %v1455
    %vm1462 = vmor %vm1460, %vm1461
    %v1463 = vsel %vm1462, %v1455, %v1459
    %v1464 = vand.u32 2147483647, %v1454
    %vm1465 = vcmp.eq.f32.partialorder %v1464, 8.507059e+37
    %v1466 = vand.u32 %v1454, 2147483648
    %v1467 = vor.u32 1.1754944e-38, %v1466
    %v1468 = vsel %vm1465, %v1467, %v1463
    %v1469 = vmul.f32 1.0, %v1468
    %v1470 = vtanh.pop %v1430
    %v1471 = vxor.u32 %v1431, 2147483648
    %v1472 = vmul.f32 %v1471, 1.442695
    %v1473 = vpow.pop %v1472
    %v1474 = vadd.f32 %v1473, 1.0
    %v1475 = vrcp.pop %v1474
    %v1476 = vmul.f32 %v1474, %v1475
    %v1477 = vsub.f32 1.0, %v1476
    %v1478 = vmul.f32 %v1475, %v1477
    %v1479 = vadd.f32 %v1475, %v1478
    %vm1480 = vweird.f32 %v1474
    %vm1481 = vweird.f32 %v1475
    %vm1482 = vmor %vm1480, %vm1481
    %v1483 = vsel %vm1482, %v1475, %v1479
    %v1484 = vand.u32 2147483647, %v1474
    %vm1485 = vcmp.eq.f32.partialorder %v1484, 8.507059e+37
    %v1486 = vand.u32 %v1474, 2147483648
    %v1487 = vor.u32 1.1754944e-38, %v1486
    %v1488 = vsel %vm1485, %v1487, %v1483
    %v1489 = vmul.f32 1.0, %v1488
    %v1490 = vmul.f32 %v1469, %v1272
    %v1491 = vmul.f32 %v1450, %v1470
    %v1492 = vadd.f32 %v1490, %v1491
    %v1493 = vtanh.pop %v1492
    %v1494 = vmul.f32 %v1489, %v1493
    %s1495 = scalar_lea.vmem [#allocation3], 32
    %1496 = vst [vmem:[%s1495] sm:$0xff] %v1494
    %s1497 = smul.u32 5, 4
    %s1498 = smul.addr %s1497, 8
    %s1499 = scalar_lea.vmem [#allocation2], %s1498
    %v1500 = vld [vmem:[%s1499] sm:$0xff]
    %v1501 = vld [vmem:[%s1499 + $0x8] sm:$0xff]
    %v1502 = vld [vmem:[%s1499 + $0x10] sm:$0xff]
    %v1503 = vld [vmem:[%s1499 + $0x18] sm:$0xff]
    %v1504 = vld [vmem:[#allocation6] sm:$0xff]
    %v1505 = vld [vmem:[#allocation6 + $0x8] sm:$0xff]
    %v1506 = vld [vmem:[#allocation6 + $0x10] sm:$0xff]
    %v1507 = vld [vmem:[#allocation6 + $0x18] sm:$0xff]
    %v1508 = vld [vmem:[#allocation6 + $0x20] sm:$0xff]
    %v1509 = vld [vmem:[#allocation6 + $0x28] sm:$0xff]
    %v1510 = vld [vmem:[#allocation6 + $0x30] sm:$0xff]
    %v1511 = vld [vmem:[#allocation6 + $0x38] sm:$0xff]
    %v1512 = vld [vmem:[#allocation6 + $0x40] sm:$0xff]
    %v1513 = vld [vmem:[#allocation6 + $0x48] sm:$0xff]
    %v1514 = vld [vmem:[#allocation6 + $0x50] sm:$0xff]
    %v1515 = vld [vmem:[#allocation6 + $0x58] sm:$0xff]
    %v1516 = vld [vmem:[#allocation6 + $0x60] sm:$0xff]
    %v1517 = vld [vmem:[#allocation6 + $0x68] sm:$0xff]
    %v1518 = vld [vmem:[#allocation6 + $0x70] sm:$0xff]
    %v1519 = vld [vmem:[#allocation6 + $0x78] sm:$0xff]
    %v1520 = vld [vmem:[#allocation6 + $0x80] sm:$0xff]
    %v1521 = vld [vmem:[#allocation6 + $0x88] sm:$0xff]
    %v1522 = vld [vmem:[#allocation6 + $0x90] sm:$0xff]
    %v1523 = vld [vmem:[#allocation6 + $0x98] sm:$0xff]
    %v1524 = vld [vmem:[#allocation6 + $0xa0] sm:$0xff]
    %v1525 = vld [vmem:[#allocation6 + $0xa8] sm:$0xff]
    %v1526 = vld [vmem:[#allocation6 + $0xb0] sm:$0xff]
    %v1527 = vld [vmem:[#allocation6 + $0xb8] sm:$0xff]
    %v1528 = vld [vmem:[#allocation6 + $0xc0] sm:$0xff]
    %v1529 = vld [vmem:[#allocation6 + $0xc8] sm:$0xff]
    %v1530 = vld [vmem:[#allocation6 + $0xd0] sm:$0xff]
    %v1531 = vld [vmem:[#allocation6 + $0xd8] sm:$0xff]
    %v1532 = vld [vmem:[#allocation6 + $0xe0] sm:$0xff]
    %v1533 = vld [vmem:[#allocation6 + $0xe8] sm:$0xff]
    %v1534 = vld [vmem:[#allocation6 + $0xf0] sm:$0xff]
    %v1535 = vld [vmem:[#allocation6 + $0xf8] sm:$0xff]
    %v1536 = vld [vmem:[#allocation6 + $0x100] sm:$0xff]
    %v1537 = vld [vmem:[#allocation6 + $0x108] sm:$0xff]
    %v1538 = vld [vmem:[#allocation6 + $0x110] sm:$0xff]
    %v1539 = vld [vmem:[#allocation6 + $0x118] sm:$0xff]
    %v1540 = vld [vmem:[#allocation6 + $0x120] sm:$0xff]
    %v1541 = vld [vmem:[#allocation6 + $0x128] sm:$0xff]
    %v1542 = vld [vmem:[#allocation6 + $0x130] sm:$0xff]
    %v1543 = vld [vmem:[#allocation6 + $0x138] sm:$0xff]
    %v1544 = vld [vmem:[#allocation6 + $0x140] sm:$0xff]
    %v1545 = vld [vmem:[#allocation6 + $0x148] sm:$0xff]
    %v1546 = vld [vmem:[#allocation6 + $0x150] sm:$0xff]
    %v1547 = vld [vmem:[#allocation6 + $0x158] sm:$0xff]
    %v1548 = vld [vmem:[#allocation6 + $0x160] sm:$0xff]
    %v1549 = vld [vmem:[#allocation6 + $0x168] sm:$0xff]
    %v1550 = vld [vmem:[#allocation6 + $0x170] sm:$0xff]
    %v1551 = vld [vmem:[#allocation6 + $0x178] sm:$0xff]
    %v1552 = vld [vmem:[#allocation6 + $0x180] sm:$0xff]
    %v1553 = vld [vmem:[#allocation6 + $0x188] sm:$0xff]
    %v1554 = vld [vmem:[#allocation6 + $0x190] sm:$0xff]
    %v1555 = vld [vmem:[#allocation6 + $0x198] sm:$0xff]
    %v1556 = vld [vmem:[#allocation6 + $0x1a0] sm:$0xff]
    %v1557 = vld [vmem:[#allocation6 + $0x1a8] sm:$0xff]
    %v1558 = vld [vmem:[#allocation6 + $0x1b0] sm:$0xff]
    %v1559 = vld [vmem:[#allocation6 + $0x1b8] sm:$0xff]
    %v1560 = vld [vmem:[#allocation6 + $0x1c0] sm:$0xff]
    %v1561 = vld [vmem:[#allocation6 + $0x1c8] sm:$0xff]
    %v1562 = vld [vmem:[#allocation6 + $0x1d0] sm:$0xff]
    %v1563 = vld [vmem:[#allocation6 + $0x1d8] sm:$0xff]
    %v1564 = vld [vmem:[#allocation6 + $0x1e0] sm:$0xff]
    %v1565 = vld [vmem:[#allocation6 + $0x1e8] sm:$0xff]
    %v1566 = vld [vmem:[#allocation6 + $0x1f0] sm:$0xff]
    %v1567 = vld [vmem:[#allocation6 + $0x1f8] sm:$0xff]
    %1568 = vmatpush.msra.mxu0 %v1564
    %1569 = vmatpush.msra.mxu0 %v1560
    %1570 = vmatpush.msra.mxu0 %v1556
    %1571 = vmatpush.msra.mxu0 %v1552
    %1572 = vmatpush.msra.mxu0 %v1548
    %1573 = vmatpush.msra.mxu0 %v1544
    %1574 = vmatpush.msra.mxu0 %v1540
    %1575 = vmatpush.msra.mxu0 %v1536
    %1576 = vmatpush.msra.mxu0 %v1532
    %1577 = vmatpush.msra.mxu0 %v1528
    %1578 = vmatpush.msra.mxu0 %v1524
    %1579 = vmatpush.msra.mxu0 %v1520
    %1580 = vmatpush.msra.mxu0 %v1516
    %1581 = vmatpush.msra.mxu0 %v1512
    %1582 = vmatpush.msra.mxu0 %v1508
    %1583 = vmatpush.msra.mxu0 %v1504
    %1584 = vmatmul.f32.gmra.mxu0 %v1494
    %v1585 = vpop.f32.mrf.mxu0
    %v1586 = vadd.f32 0.0, %v1585
    %1587 = vdwg.mxu0
    %1588 = vmatpush.msra.mxu0 %v1565
    %1589 = vmatpush.msra.mxu0 %v1561
    %1590 = vmatpush.msra.mxu0 %v1557
    %1591 = vmatpush.msra.mxu0 %v1553
    %1592 = vmatpush.msra.mxu0 %v1549
    %1593 = vmatpush.msra.mxu0 %v1545
    %1594 = vmatpush.msra.mxu0 %v1541
    %1595 = vmatpush.msra.mxu0 %v1537
    %1596 = vmatpush.msra.mxu0 %v1533
    %1597 = vmatpush.msra.mxu0 %v1529
    %1598 = vmatpush.msra.mxu0 %v1525
    %1599 = vmatpush.msra.mxu0 %v1521
    %1600 = vmatpush.msra.mxu0 %v1517
    %1601 = vmatpush.msra.mxu0 %v1513
    %1602 = vmatpush.msra.mxu0 %v1509
    %1603 = vmatpush.msra.mxu0 %v1505
    %1604 = vmatmul.f32.gmra.mxu0 %v1494
    %v1605 = vpop.f32.mrf.mxu0
    %v1606 = vadd.f32 0.0, %v1605
    %1607 = vdwg.mxu0
    %1608 = vmatpush.msra.mxu0 %v1566
    %1609 = vmatpush.msra.mxu0 %v1562
    %1610 = vmatpush.msra.mxu0 %v1558
    %1611 = vmatpush.msra.mxu0 %v1554
    %1612 = vmatpush.msra.mxu0 %v1550
    %1613 = vmatpush.msra.mxu0 %v1546
    %1614 = vmatpush.msra.mxu0 %v1542
    %1615 = vmatpush.msra.mxu0 %v1538
    %1616 = vmatpush.msra.mxu0 %v1534
    %1617 = vmatpush.msra.mxu0 %v1530
    %1618 = vmatpush.msra.mxu0 %v1526
    %1619 = vmatpush.msra.mxu0 %v1522
    %1620 = vmatpush.msra.mxu0 %v1518
    %1621 = vmatpush.msra.mxu0 %v1514
    %1622 = vmatpush.msra.mxu0 %v1510
    %1623 = vmatpush.msra.mxu0 %v1506
    %1624 = vmatmul.f32.gmra.mxu0 %v1494
    %v1625 = vpop.f32.mrf.mxu0
    %v1626 = vadd.f32 0.0, %v1625
    %1627 = vdwg.mxu0
    %1628 = vmatpush.msra.mxu0 %v1567
    %1629 = vmatpush.msra.mxu0 %v1563
    %1630 = vmatpush.msra.mxu0 %v1559
    %1631 = vmatpush.msra.mxu0 %v1555
    %1632 = vmatpush.msra.mxu0 %v1551
    %1633 = vmatpush.msra.mxu0 %v1547
    %1634 = vmatpush.msra.mxu0 %v1543
    %1635 = vmatpush.msra.mxu0 %v1539
    %1636 = vmatpush.msra.mxu0 %v1535
    %1637 = vmatpush.msra.mxu0 %v1531
    %1638 = vmatpush.msra.mxu0 %v1527
    %1639 = vmatpush.msra.mxu0 %v1523
    %1640 = vmatpush.msra.mxu0 %v1519
    %1641 = vmatpush.msra.mxu0 %v1515
    %1642 = vmatpush.msra.mxu0 %v1511
    %1643 = vmatpush.msra.mxu0 %v1507
    %1644 = vmatmul.f32.gmra.mxu0 %v1494
    %v1645 = vpop.f32.mrf.mxu0
    %v1646 = vadd.f32 0.0, %v1645
    %1647 = vdwg.mxu0
    %v1648 = vadd.f32 %v1500, %v1586
    %v1649 = vadd.f32 %v1501, %v1606
    %v1650 = vadd.f32 %v1502, %v1626
    %v1651 = vadd.f32 %v1503, %v1646
    %v1652 = vxor.u32 %v1648, 2147483648
    %v1653 = vmul.f32 %v1652, 1.442695
    %v1654 = vpow.pop %v1653
    %v1655 = vadd.f32 %v1654, 1.0
    %v1656 = vrcp.pop %v1655
    %v1657 = vmul.f32 %v1655, %v1656
    %v1658 = vsub.f32 1.0, %v1657
    %v1659 = vmul.f32 %v1656, %v1658
    %v1660 = vadd.f32 %v1656, %v1659
    %vm1661 = vweird.f32 %v1655
    %vm1662 = vweird.f32 %v1656
    %vm1663 = vmor %vm1661, %vm1662
    %v1664 = vsel %vm1663, %v1656, %v1660
    %v1665 = vand.u32 2147483647, %v1655
    %vm1666 = vcmp.eq.f32.partialorder %v1665, 8.507059e+37
    %v1667 = vand.u32 %v1655, 2147483648
    %v1668 = vor.u32 1.1754944e-38, %v1667
    %v1669 = vsel %vm1666, %v1668, %v1664
    %v1670 = vmul.f32 1.0, %v1669
    %v1671 = vxor.u32 %v1649, 2147483648
    %v1672 = vmul.f32 %v1671, 1.442695
    %v1673 = vpow.pop %v1672
    %v1674 = vadd.f32 %v1673, 1.0
    %v1675 = vrcp.pop %v1674
    %v1676 = vmul.f32 %v1674, %v1675
    %v1677 = vsub.f32 1.0, %v1676
    %v1678 = vmul.f32 %v1675, %v1677
    %v1679 = vadd.f32 %v1675, %v1678
    %vm1680 = vweird.f32 %v1674
    %vm1681 = vweird.f32 %v1675
    %vm1682 = vmor %vm1680, %vm1681
    %v1683 = vsel %vm1682, %v1675, %v1679
    %v1684 = vand.u32 2147483647, %v1674
    %vm1685 = vcmp.eq.f32.partialorder %v1684, 8.507059e+37
    %v1686 = vand.u32 %v1674, 2147483648
    %v1687 = vor.u32 1.1754944e-38, %v1686
    %v1688 = vsel %vm1685, %v1687, %v1683
    %v1689 = vmul.f32 1.0, %v1688
    %v1690 = vtanh.pop %v1650
    %v1691 = vxor.u32 %v1651, 2147483648
    %v1692 = vmul.f32 %v1691, 1.442695
    %v1693 = vpow.pop %v1692
    %v1694 = vadd.f32 %v1693, 1.0
    %v1695 = vrcp.pop %v1694
    %v1696 = vmul.f32 %v1694, %v1695
    %v1697 = vsub.f32 1.0, %v1696
    %v1698 = vmul.f32 %v1695, %v1697
    %v1699 = vadd.f32 %v1695, %v1698
    %vm1700 = vweird.f32 %v1694
    %vm1701 = vweird.f32 %v1695
    %vm1702 = vmor %vm1700, %vm1701
    %v1703 = vsel %vm1702, %v1695, %v1699
    %v1704 = vand.u32 2147483647, %v1694
    %vm1705 = vcmp.eq.f32.partialorder %v1704, 8.507059e+37
    %v1706 = vand.u32 %v1694, 2147483648
    %v1707 = vor.u32 1.1754944e-38, %v1706
    %v1708 = vsel %vm1705, %v1707, %v1703
    %v1709 = vmul.f32 1.0, %v1708
    %v1710 = vmul.f32 %v1689, %v1492
    %v1711 = vmul.f32 %v1670, %v1690
    %v1712 = vadd.f32 %v1710, %v1711
    %v1713 = vtanh.pop %v1712
    %v1714 = vmul.f32 %v1709, %v1713
    %s1715 = scalar_lea.vmem [#allocation3], 40
    %1716 = vst [vmem:[%s1715] sm:$0xff] %v1714
    %s1717 = smul.u32 6, 4
    %s1718 = smul.addr %s1717, 8
    %s1719 = scalar_lea.vmem [#allocation2], %s1718
    %v1720 = vld [vmem:[%s1719] sm:$0xff]
    %v1721 = vld [vmem:[%s1719 + $0x8] sm:$0xff]
    %v1722 = vld [vmem:[%s1719 + $0x10] sm:$0xff]
    %v1723 = vld [vmem:[%s1719 + $0x18] sm:$0xff]
    %v1724 = vld [vmem:[#allocation6] sm:$0xff]
    %v1725 = vld [vmem:[#allocation6 + $0x8] sm:$0xff]
    %v1726 = vld [vmem:[#allocation6 + $0x10] sm:$0xff]
    %v1727 = vld [vmem:[#allocation6 + $0x18] sm:$0xff]
    %v1728 = vld [vmem:[#allocation6 + $0x20] sm:$0xff]
    %v1729 = vld [vmem:[#allocation6 + $0x28] sm:$0xff]
    %v1730 = vld [vmem:[#allocation6 + $0x30] sm:$0xff]
    %v1731 = vld [vmem:[#allocation6 + $0x38] sm:$0xff]
    %v1732 = vld [vmem:[#allocation6 + $0x40] sm:$0xff]
    %v1733 = vld [vmem:[#allocation6 + $0x48] sm:$0xff]
    %v1734 = vld [vmem:[#allocation6 + $0x50] sm:$0xff]
    %v1735 = vld [vmem:[#allocation6 + $0x58] sm:$0xff]
    %v1736 = vld [vmem:[#allocation6 + $0x60] sm:$0xff]
    %v1737 = vld [vmem:[#allocation6 + $0x68] sm:$0xff]
    %v1738 = vld [vmem:[#allocation6 + $0x70] sm:$0xff]
    %v1739 = vld [vmem:[#allocation6 + $0x78] sm:$0xff]
    %v1740 = vld [vmem:[#allocation6 + $0x80] sm:$0xff]
    %v1741 = vld [vmem:[#allocation6 + $0x88] sm:$0xff]
    %v1742 = vld [vmem:[#allocation6 + $0x90] sm:$0xff]
    %v1743 = vld [vmem:[#allocation6 + $0x98] sm:$0xff]
    %v1744 = vld [vmem:[#allocation6 + $0xa0] sm:$0xff]
    %v1745 = vld [vmem:[#allocation6 + $0xa8] sm:$0xff]
    %v1746 = vld [vmem:[#allocation6 + $0xb0] sm:$0xff]
    %v1747 = vld [vmem:[#allocation6 + $0xb8] sm:$0xff]
    %v1748 = vld [vmem:[#allocation6 + $0xc0] sm:$0xff]
    %v1749 = vld [vmem:[#allocation6 + $0xc8] sm:$0xff]
    %v1750 = vld [vmem:[#allocation6 + $0xd0] sm:$0xff]
    %v1751 = vld [vmem:[#allocation6 + $0xd8] sm:$0xff]
    %v1752 = vld [vmem:[#allocation6 + $0xe0] sm:$0xff]
    %v1753 = vld [vmem:[#allocation6 + $0xe8] sm:$0xff]
    %v1754 = vld [vmem:[#allocation6 + $0xf0] sm:$0xff]
    %v1755 = vld [vmem:[#allocation6 + $0xf8] sm:$0xff]
    %v1756 = vld [vmem:[#allocation6 + $0x100] sm:$0xff]
    %v1757 = vld [vmem:[#allocation6 + $0x108] sm:$0xff]
    %v1758 = vld [vmem:[#allocation6 + $0x110] sm:$0xff]
    %v1759 = vld [vmem:[#allocation6 + $0x118] sm:$0xff]
    %v1760 = vld [vmem:[#allocation6 + $0x120] sm:$0xff]
    %v1761 = vld [vmem:[#allocation6 + $0x128] sm:$0xff]
    %v1762 = vld [vmem:[#allocation6 + $0x130] sm:$0xff]
    %v1763 = vld [vmem:[#allocation6 + $0x138] sm:$0xff]
    %v1764 = vld [vmem:[#allocation6 + $0x140] sm:$0xff]
    %v1765 = vld [vmem:[#allocation6 + $0x148] sm:$0xff]
    %v1766 = vld [vmem:[#allocation6 + $0x150] sm:$0xff]
    %v1767 = vld [vmem:[#allocation6 + $0x158] sm:$0xff]
    %v1768 = vld [vmem:[#allocation6 + $0x160] sm:$0xff]
    %v1769 = vld [vmem:[#allocation6 + $0x168] sm:$0xff]
    %v1770 = vld [vmem:[#allocation6 + $0x170] sm:$0xff]
    %v1771 = vld [vmem:[#allocation6 + $0x178] sm:$0xff]
    %v1772 = vld [vmem:[#allocation6 + $0x180] sm:$0xff]
    %v1773 = vld [vmem:[#allocation6 + $0x188] sm:$0xff]
    %v1774 = vld [vmem:[#allocation6 + $0x190] sm:$0xff]
    %v1775 = vld [vmem:[#allocation6 + $0x198] sm:$0xff]
    %v1776 = vld [vmem:[#allocation6 + $0x1a0] sm:$0xff]
    %v1777 = vld [vmem:[#allocation6 + $0x1a8] sm:$0xff]
    %v1778 = vld [vmem:[#allocation6 + $0x1b0] sm:$0xff]
    %v1779 = vld [vmem:[#allocation6 + $0x1b8] sm:$0xff]
    %v1780 = vld [vmem:[#allocation6 + $0x1c0] sm:$0xff]
    %v1781 = vld [vmem:[#allocation6 + $0x1c8] sm:$0xff]
    %v1782 = vld [vmem:[#allocation6 + $0x1d0] sm:$0xff]
    %v1783 = vld [vmem:[#allocation6 + $0x1d8] sm:$0xff]
    %v1784 = vld [vmem:[#allocation6 + $0x1e0] sm:$0xff]
    %v1785 = vld [vmem:[#allocation6 + $0x1e8] sm:$0xff]
    %v1786 = vld [vmem:[#allocation6 + $0x1f0] sm:$0xff]
    %v1787 = vld [vmem:[#allocation6 + $0x1f8] sm:$0xff]
    %1788 = vmatpush.msra.mxu0 %v1784
    %1789 = vmatpush.msra.mxu0 %v1780
    %1790 = vmatpush.msra.mxu0 %v1776
    %1791 = vmatpush.msra.mxu0 %v1772
    %1792 = vmatpush.msra.mxu0 %v1768
    %1793 = vmatpush.msra.mxu0 %v1764
    %1794 = vmatpush.msra.mxu0 %v1760
    %1795 = vmatpush.msra.mxu0 %v1756
    %1796 = vmatpush.msra.mxu0 %v1752
    %1797 = vmatpush.msra.mxu0 %v1748
    %1798 = vmatpush.msra.mxu0 %v1744
    %1799 = vmatpush.msra.mxu0 %v1740
    %1800 = vmatpush.msra.mxu0 %v1736
    %1801 = vmatpush.msra.mxu0 %v1732
    %1802 = vmatpush.msra.mxu0 %v1728
    %1803 = vmatpush.msra.mxu0 %v1724
    %1804 = vmatmul.f32.gmra.mxu0 %v1714
    %v1805 = vpop.f32.mrf.mxu0
    %v1806 = vadd.f32 0.0, %v1805
    %1807 = vdwg.mxu0
    %1808 = vmatpush.msra.mxu0 %v1785
    %1809 = vmatpush.msra.mxu0 %v1781
    %1810 = vmatpush.msra.mxu0 %v1777
    %1811 = vmatpush.msra.mxu0 %v1773
    %1812 = vmatpush.msra.mxu0 %v1769
    %1813 = vmatpush.msra.mxu0 %v1765
    %1814 = vmatpush.msra.mxu0 %v1761
    %1815 = vmatpush.msra.mxu0 %v1757
    %1816 = vmatpush.msra.mxu0 %v1753
    %1817 = vmatpush.msra.mxu0 %v1749
    %1818 = vmatpush.msra.mxu0 %v1745
    %1819 = vmatpush.msra.mxu0 %v1741
    %1820 = vmatpush.msra.mxu0 %v1737
    %1821 = vmatpush.msra.mxu0 %v1733
    %1822 = vmatpush.msra.mxu0 %v1729
    %1823 = vmatpush.msra.mxu0 %v1725
    %1824 = vmatmul.f32.gmra.mxu0 %v1714
    %v1825 = vpop.f32.mrf.mxu0
    %v1826 = vadd.f32 0.0, %v1825
    %1827 = vdwg.mxu0
    %1828 = vmatpush.msra.mxu0 %v1786
    %1829 = vmatpush.msra.mxu0 %v1782
    %1830 = vmatpush.msra.mxu0 %v1778
    %1831 = vmatpush.msra.mxu0 %v1774
    %1832 = vmatpush.msra.mxu0 %v1770
    %1833 = vmatpush.msra.mxu0 %v1766
    %1834 = vmatpush.msra.mxu0 %v1762
    %1835 = vmatpush.msra.mxu0 %v1758
    %1836 = vmatpush.msra.mxu0 %v1754
    %1837 = vmatpush.msra.mxu0 %v1750
    %1838 = vmatpush.msra.mxu0 %v1746
    %1839 = vmatpush.msra.mxu0 %v1742
    %1840 = vmatpush.msra.mxu0 %v1738
    %1841 = vmatpush.msra.mxu0 %v1734
    %1842 = vmatpush.msra.mxu0 %v1730
    %1843 = vmatpush.msra.mxu0 %v1726
    %1844 = vmatmul.f32.gmra.mxu0 %v1714
    %v1845 = vpop.f32.mrf.mxu0
    %v1846 = vadd.f32 0.0, %v1845
    %1847 = vdwg.mxu0
    %1848 = vmatpush.msra.mxu0 %v1787
    %1849 = vmatpush.msra.mxu0 %v1783
    %1850 = vmatpush.msra.mxu0 %v1779
    %1851 = vmatpush.msra.mxu0 %v1775
    %1852 = vmatpush.msra.mxu0 %v1771
    %1853 = vmatpush.msra.mxu0 %v1767
    %1854 = vmatpush.msra.mxu0 %v1763
    %1855 = vmatpush.msra.mxu0 %v1759
    %1856 = vmatpush.msra.mxu0 %v1755
    %1857 = vmatpush.msra.mxu0 %v1751
    %1858 = vmatpush.msra.mxu0 %v1747
    %1859 = vmatpush.msra.mxu0 %v1743
    %1860 = vmatpush.msra.mxu0 %v1739
    %1861 = vmatpush.msra.mxu0 %v1735
    %1862 = vmatpush.msra.mxu0 %v1731
    %1863 = vmatpush.msra.mxu0 %v1727
    %1864 = vmatmul.f32.gmra.mxu0 %v1714
    %v1865 = vpop.f32.mrf.mxu0
    %v1866 = vadd.f32 0.0, %v1865
    %1867 = vdwg.mxu0
    %v1868 = vadd.f32 %v1720, %v1806
    %v1869 = vadd.f32 %v1721, %v1826
    %v1870 = vadd.f32 %v1722, %v1846
    %v1871 = vadd.f32 %v1723, %v1866
    %v1872 = vxor.u32 %v1868, 2147483648
    %v1873 = vmul.f32 %v1872, 1.442695
    %v1874 = vpow.pop %v1873
    %v1875 = vadd.f32 %v1874, 1.0
    %v1876 = vrcp.pop %v1875
    %v1877 = vmul.f32 %v1875, %v1876
    %v1878 = vsub.f32 1.0, %v1877
    %v1879 = vmul.f32 %v1876, %v1878
    %v1880 = vadd.f32 %v1876, %v1879
    %vm1881 = vweird.f32 %v1875
    %vm1882 = vweird.f32 %v1876
    %vm1883 = vmor %vm1881, %vm1882
    %v1884 = vsel %vm1883, %v1876, %v1880
    %v1885 = vand.u32 2147483647, %v1875
    %vm1886 = vcmp.eq.f32.partialorder %v1885, 8.507059e+37
    %v1887 = vand.u32 %v1875, 2147483648
    %v1888 = vor.u32 1.1754944e-38, %v1887
    %v1889 = vsel %vm1886, %v1888, %v1884
    %v1890 = vmul.f32 1.0, %v1889
    %v1891 = vxor.u32 %v1869, 2147483648
    %v1892 = vmul.f32 %v1891, 1.442695
    %v1893 = vpow.pop %v1892
    %v1894 = vadd.f32 %v1893, 1.0
    %v1895 = vrcp.pop %v1894
    %v1896 = vmul.f32 %v1894, %v1895
    %v1897 = vsub.f32 1.0, %v1896
    %v1898 = vmul.f32 %v1895, %v1897
    %v1899 = vadd.f32 %v1895, %v1898
    %vm1900 = vweird.f32 %v1894
    %vm1901 = vweird.f32 %v1895
    %vm1902 = vmor %vm1900, %vm1901
    %v1903 = vsel %vm1902, %v1895, %v1899
    %v1904 = vand.u32 2147483647, %v1894
    %vm1905 = vcmp.eq.f32.partialorder %v1904, 8.507059e+37
    %v1906 = vand.u32 %v1894, 2147483648
    %v1907 = vor.u32 1.1754944e-38, %v1906
    %v1908 = vsel %vm1905, %v1907, %v1903
    %v1909 = vmul.f32 1.0, %v1908
    %v1910 = vtanh.pop %v1870
    %v1911 = vxor.u32 %v1871, 2147483648
    %v1912 = vmul.f32 %v1911, 1.442695
    %v1913 = vpow.pop %v1912
    %v1914 = vadd.f32 %v1913, 1.0
    %v1915 = vrcp.pop %v1914
    %v1916 = vmul.f32 %v1914, %v1915
    %v1917 = vsub.f32 1.0, %v1916
    %v1918 = vmul.f32 %v1915, %v1917
    %v1919 = vadd.f32 %v1915, %v1918
    %vm1920 = vweird.f32 %v1914
    %vm1921 = vweird.f32 %v1915
    %vm1922 = vmor %vm1920, %vm1921
    %v1923 = vsel %vm1922, %v1915, %v1919
    %v1924 = vand.u32 2147483647, %v1914
    %vm1925 = vcmp.eq.f32.partialorder %v1924, 8.507059e+37
    %v1926 = vand.u32 %v1914, 2147483648
    %v1927 = vor.u32 1.1754944e-38, %v1926
    %v1928 = vsel %vm1925, %v1927, %v1923
    %v1929 = vmul.f32 1.0, %v1928
    %v1930 = vmul.f32 %v1909, %v1712
    %v1931 = vmul.f32 %v1890, %v1910
    %v1932 = vadd.f32 %v1930, %v1931
    %v1933 = vtanh.pop %v1932
    %v1934 = vmul.f32 %v1929, %v1933
    %s1935 = scalar_lea.vmem [#allocation3], 48
    %1936 = vst [vmem:[%s1935] sm:$0xff] %v1934
    %s1937 = smul.u32 7, 4
    %s1938 = smul.addr %s1937, 8
    %s1939 = scalar_lea.vmem [#allocation2], %s1938
    %v1940 = vld [vmem:[%s1939] sm:$0xff]
    %v1941 = vld [vmem:[%s1939 + $0x8] sm:$0xff]
    %v1942 = vld [vmem:[%s1939 + $0x10] sm:$0xff]
    %v1943 = vld [vmem:[%s1939 + $0x18] sm:$0xff]
    %v1944 = vld [vmem:[#allocation6] sm:$0xff]
    %v1945 = vld [vmem:[#allocation6 + $0x8] sm:$0xff]
    %v1946 = vld [vmem:[#allocation6 + $0x10] sm:$0xff]
    %v1947 = vld [vmem:[#allocation6 + $0x18] sm:$0xff]
    %v1948 = vld [vmem:[#allocation6 + $0x20] sm:$0xff]
    %v1949 = vld [vmem:[#allocation6 + $0x28] sm:$0xff]
    %v1950 = vld [vmem:[#allocation6 + $0x30] sm:$0xff]
    %v1951 = vld [vmem:[#allocation6 + $0x38] sm:$0xff]
    %v1952 = vld [vmem:[#allocation6 + $0x40] sm:$0xff]
    %v1953 = vld [vmem:[#allocation6 + $0x48] sm:$0xff]
    %v1954 = vld [vmem:[#allocation6 + $0x50] sm:$0xff]
    %v1955 = vld [vmem:[#allocation6 + $0x58] sm:$0xff]
    %v1956 = vld [vmem:[#allocation6 + $0x60] sm:$0xff]
    %v1957 = vld [vmem:[#allocation6 + $0x68] sm:$0xff]
    %v1958 = vld [vmem:[#allocation6 + $0x70] sm:$0xff]
    %v1959 = vld [vmem:[#allocation6 + $0x78] sm:$0xff]
    %v1960 = vld [vmem:[#allocation6 + $0x80] sm:$0xff]
    %v1961 = vld [vmem:[#allocation6 + $0x88] sm:$0xff]
    %v1962 = vld [vmem:[#allocation6 + $0x90] sm:$0xff]
    %v1963 = vld [vmem:[#allocation6 + $0x98] sm:$0xff]
    %v1964 = vld [vmem:[#allocation6 + $0xa0] sm:$0xff]
    %v1965 = vld [vmem:[#allocation6 + $0xa8] sm:$0xff]
    %v1966 = vld [vmem:[#allocation6 + $0xb0] sm:$0xff]
    %v1967 = vld [vmem:[#allocation6 + $0xb8] sm:$0xff]
    %v1968 = vld [vmem:[#allocation6 + $0xc0] sm:$0xff]
    %v1969 = vld [vmem:[#allocation6 + $0xc8] sm:$0xff]
    %v1970 = vld [vmem:[#allocation6 + $0xd0] sm:$0xff]
    %v1971 = vld [vmem:[#allocation6 + $0xd8] sm:$0xff]
    %v1972 = vld [vmem:[#allocation6 + $0xe0] sm:$0xff]
    %v1973 = vld [vmem:[#allocation6 + $0xe8] sm:$0xff]
    %v1974 = vld [vmem:[#allocation6 + $0xf0] sm:$0xff]
    %v1975 = vld [vmem:[#allocation6 + $0xf8] sm:$0xff]
    %v1976 = vld [vmem:[#allocation6 + $0x100] sm:$0xff]
    %v1977 = vld [vmem:[#allocation6 + $0x108] sm:$0xff]
    %v1978 = vld [vmem:[#allocation6 + $0x110] sm:$0xff]
    %v1979 = vld [vmem:[#allocation6 + $0x118] sm:$0xff]
    %v1980 = vld [vmem:[#allocation6 + $0x120] sm:$0xff]
    %v1981 = vld [vmem:[#allocation6 + $0x128] sm:$0xff]
    %v1982 = vld [vmem:[#allocation6 + $0x130] sm:$0xff]
    %v1983 = vld [vmem:[#allocation6 + $0x138] sm:$0xff]
    %v1984 = vld [vmem:[#allocation6 + $0x140] sm:$0xff]
    %v1985 = vld [vmem:[#allocation6 + $0x148] sm:$0xff]
    %v1986 = vld [vmem:[#allocation6 + $0x150] sm:$0xff]
    %v1987 = vld [vmem:[#allocation6 + $0x158] sm:$0xff]
    %v1988 = vld [vmem:[#allocation6 + $0x160] sm:$0xff]
    %v1989 = vld [vmem:[#allocation6 + $0x168] sm:$0xff]
    %v1990 = vld [vmem:[#allocation6 + $0x170] sm:$0xff]
    %v1991 = vld [vmem:[#allocation6 + $0x178] sm:$0xff]
    %v1992 = vld [vmem:[#allocation6 + $0x180] sm:$0xff]
    %v1993 = vld [vmem:[#allocation6 + $0x188] sm:$0xff]
    %v1994 = vld [vmem:[#allocation6 + $0x190] sm:$0xff]
    %v1995 = vld [vmem:[#allocation6 + $0x198] sm:$0xff]
    %v1996 = vld [vmem:[#allocation6 + $0x1a0] sm:$0xff]
    %v1997 = vld [vmem:[#allocation6 + $0x1a8] sm:$0xff]
    %v1998 = vld [vmem:[#allocation6 + $0x1b0] sm:$0xff]
    %v1999 = vld [vmem:[#allocation6 + $0x1b8] sm:$0xff]
    %v2000 = vld [vmem:[#allocation6 + $0x1c0] sm:$0xff]
    %v2001 = vld [vmem:[#allocation6 + $0x1c8] sm:$0xff]
    %v2002 = vld [vmem:[#allocation6 + $0x1d0] sm:$0xff]
    %v2003 = vld [vmem:[#allocation6 + $0x1d8] sm:$0xff]
    %v2004 = vld [vmem:[#allocation6 + $0x1e0] sm:$0xff]
    %v2005 = vld [vmem:[#allocation6 + $0x1e8] sm:$0xff]
    %v2006 = vld [vmem:[#allocation6 + $0x1f0] sm:$0xff]
    %v2007 = vld [vmem:[#allocation6 + $0x1f8] sm:$0xff]
    %2008 = vmatpush.msra.mxu0 %v2004
    %2009 = vmatpush.msra.mxu0 %v2000
    %2010 = vmatpush.msra.mxu0 %v1996
    %2011 = vmatpush.msra.mxu0 %v1992
    %2012 = vmatpush.msra.mxu0 %v1988
    %2013 = vmatpush.msra.mxu0 %v1984
    %2014 = vmatpush.msra.mxu0 %v1980
    %2015 = vmatpush.msra.mxu0 %v1976
    %2016 = vmatpush.msra.mxu0 %v1972
    %2017 = vmatpush.msra.mxu0 %v1968
    %2018 = vmatpush.msra.mxu0 %v1964
    %2019 = vmatpush.msra.mxu0 %v1960
    %2020 = vmatpush.msra.mxu0 %v1956
    %2021 = vmatpush.msra.mxu0 %v1952
    %2022 = vmatpush.msra.mxu0 %v1948
    %2023 = vmatpush.msra.mxu0 %v1944
    %2024 = vmatmul.f32.gmra.mxu0 %v1934
    %v2025 = vpop.f32.mrf.mxu0
    %v2026 = vadd.f32 0.0, %v2025
    %2027 = vdwg.mxu0
    %2028 = vmatpush.msra.mxu0 %v2005
    %2029 = vmatpush.msra.mxu0 %v2001
    %2030 = vmatpush.msra.mxu0 %v1997
    %2031 = vmatpush.msra.mxu0 %v1993
    %2032 = vmatpush.msra.mxu0 %v1989
    %2033 = vmatpush.msra.mxu0 %v1985
    %2034 = vmatpush.msra.mxu0 %v1981
    %2035 = vmatpush.msra.mxu0 %v1977
    %2036 = vmatpush.msra.mxu0 %v1973
    %2037 = vmatpush.msra.mxu0 %v1969
    %2038 = vmatpush.msra.mxu0 %v1965
    %2039 = vmatpush.msra.mxu0 %v1961
    %2040 = vmatpush.msra.mxu0 %v1957
    %2041 = vmatpush.msra.mxu0 %v1953
    %2042 = vmatpush.msra.mxu0 %v1949
    %2043 = vmatpush.msra.mxu0 %v1945
    %2044 = vmatmul.f32.gmra.mxu0 %v1934
    %v2045 = vpop.f32.mrf.mxu0
    %v2046 = vadd.f32 0.0, %v2045
    %2047 = vdwg.mxu0
    %2048 = vmatpush.msra.mxu0 %v2006
    %2049 = vmatpush.msra.mxu0 %v2002
    %2050 = vmatpush.msra.mxu0 %v1998
    %2051 = vmatpush.msra.mxu0 %v1994
    %2052 = vmatpush.msra.mxu0 %v1990
    %2053 = vmatpush.msra.mxu0 %v1986
    %2054 = vmatpush.msra.mxu0 %v1982
    %2055 = vmatpush.msra.mxu0 %v1978
    %2056 = vmatpush.msra.mxu0 %v1974
    %2057 = vmatpush.msra.mxu0 %v1970
    %2058 = vmatpush.msra.mxu0 %v1966
    %2059 = vmatpush.msra.mxu0 %v1962
    %2060 = vmatpush.msra.mxu0 %v1958
    %2061 = vmatpush.msra.mxu0 %v1954
    %2062 = vmatpush.msra.mxu0 %v1950
    %2063 = vmatpush.msra.mxu0 %v1946
    %2064 = vmatmul.f32.gmra.mxu0 %v1934
    %v2065 = vpop.f32.mrf.mxu0
    %v2066 = vadd.f32 0.0, %v2065
    %2067 = vdwg.mxu0
    %2068 = vmatpush.msra.mxu0 %v2007
    %2069 = vmatpush.msra.mxu0 %v2003
    %2070 = vmatpush.msra.mxu0 %v1999
    %2071 = vmatpush.msra.mxu0 %v1995
    %2072 = vmatpush.msra.mxu0 %v1991
    %2073 = vmatpush.msra.mxu0 %v1987
    %2074 = vmatpush.msra.mxu0 %v1983
    %2075 = vmatpush.msra.mxu0 %v1979
    %2076 = vmatpush.msra.mxu0 %v1975
    %2077 = vmatpush.msra.mxu0 %v1971
    %2078 = vmatpush.msra.mxu0 %v1967
    %2079 = vmatpush.msra.mxu0 %v1963
    %2080 = vmatpush.msra.mxu0 %v1959
    %2081 = vmatpush.msra.mxu0 %v1955
    %2082 = vmatpush.msra.mxu0 %v1951
    %2083 = vmatpush.msra.mxu0 %v1947
    %2084 = vmatmul.f32.gmra.mxu0 %v1934
    %v2085 = vpop.f32.mrf.mxu0
    %v2086 = vadd.f32 0.0, %v2085
    %2087 = vdwg.mxu0
    %v2088 = vadd.f32 %v1940, %v2026
    %v2089 = vadd.f32 %v1941, %v2046
    %v2090 = vadd.f32 %v1942, %v2066
    %v2091 = vadd.f32 %v1943, %v2086
    %v2092 = vxor.u32 %v2088, 2147483648
    %v2093 = vmul.f32 %v2092, 1.442695
    %v2094 = vpow.pop %v2093
    %v2095 = vadd.f32 %v2094, 1.0
    %v2096 = vrcp.pop %v2095
    %v2097 = vmul.f32 %v2095, %v2096
    %v2098 = vsub.f32 1.0, %v2097
    %v2099 = vmul.f32 %v2096, %v2098
    %v2100 = vadd.f32 %v2096, %v2099
    %vm2101 = vweird.f32 %v2095
    %vm2102 = vweird.f32 %v2096
    %vm2103 = vmor %vm2101, %vm2102
    %v2104 = vsel %vm2103, %v2096, %v2100
    %v2105 = vand.u32 2147483647, %v2095
    %vm2106 = vcmp.eq.f32.partialorder %v2105, 8.507059e+37
    %v2107 = vand.u32 %v2095, 2147483648
    %v2108 = vor.u32 1.1754944e-38, %v2107
    %v2109 = vsel %vm2106, %v2108, %v2104
    %v2110 = vmul.f32 1.0, %v2109
    %v2111 = vxor.u32 %v2089, 2147483648
    %v2112 = vmul.f32 %v2111, 1.442695
    %v2113 = vpow.pop %v2112
    %v2114 = vadd.f32 %v2113, 1.0
    %v2115 = vrcp.pop %v2114
    %v2116 = vmul.f32 %v2114, %v2115
    %v2117 = vsub.f32 1.0, %v2116
    %v2118 = vmul.f32 %v2115, %v2117
    %v2119 = vadd.f32 %v2115, %v2118
    %vm2120 = vweird.f32 %v2114
    %vm2121 = vweird.f32 %v2115
    %vm2122 = vmor %vm2120, %vm2121
    %v2123 = vsel %vm2122, %v2115, %v2119
    %v2124 = vand.u32 2147483647, %v2114
    %vm2125 = vcmp.eq.f32.partialorder %v2124, 8.507059e+37
    %v2126 = vand.u32 %v2114, 2147483648
    %v2127 = vor.u32 1.1754944e-38, %v2126
    %v2128 = vsel %vm2125, %v2127, %v2123
    %v2129 = vmul.f32 1.0, %v2128
    %v2130 = vtanh.pop %v2090
    %v2131 = vxor.u32 %v2091, 2147483648
    %v2132 = vmul.f32 %v2131, 1.442695
    %v2133 = vpow.pop %v2132
    %v2134 = vadd.f32 %v2133, 1.0
    %v2135 = vrcp.pop %v2134
    %v2136 = vmul.f32 %v2134, %v2135
    %v2137 = vsub.f32 1.0, %v2136
    %v2138 = vmul.f32 %v2135, %v2137
    %v2139 = vadd.f32 %v2135, %v2138
    %vm2140 = vweird.f32 %v2134
    %vm2141 = vweird.f32 %v2135
    %vm2142 = vmor %vm2140, %vm2141
    %v2143 = vsel %vm2142, %v2135, %v2139
    %v2144 = vand.u32 2147483647, %v2134
    %vm2145 = vcmp.eq.f32.partialorder %v2144, 8.507059e+37
    %v2146 = vand.u32 %v2134, 2147483648
    %v2147 = vor.u32 1.1754944e-38, %v2146
    %v2148 = vsel %vm2145, %v2147, %v2143
    %v2149 = vmul.f32 1.0, %v2148
    %v2150 = vmul.f32 %v2129, %v1932
    %v2151 = vmul.f32 %v2110, %v2130
    %v2152 = vadd.f32 %v2150, %v2151
    %v2153 = vtanh.pop %v2152
    %v2154 = vmul.f32 %v2149, %v2153
    %s2155 = scalar_lea.vmem [#allocation3], 56
    %2156 = vst [vmem:[%s2155] sm:$0xff] %v2154
    %v2157 = vld [vmem:[#allocation3] sm:$0xff]
    %v2158 = vld [vmem:[#allocation3 + $0x8] sm:$0xff]
    %v2159 = vld [vmem:[#allocation3 + $0x10] sm:$0xff]
    %v2160 = vld [vmem:[#allocation3 + $0x18] sm:$0xff]
    %v2161 = vld [vmem:[#allocation3 + $0x20] sm:$0xff]
    %v2162 = vld [vmem:[#allocation3 + $0x28] sm:$0xff]
    %v2163 = vld [vmem:[#allocation3 + $0x30] sm:$0xff]
    %v2164 = vld [vmem:[#allocation3 + $0x38] sm:$0xff]
    %v2165 = vld [vmem:[#allocation8] sm:$0xff]
    %v2166 = vld [vmem:[#allocation8 + $0x8] sm:$0xff]
    %v2167 = vld [vmem:[#allocation8 + $0x10] sm:$0xff]
    %v2168 = vld [vmem:[#allocation8 + $0x18] sm:$0xff]
    %v2169 = vld [vmem:[#allocation8 + $0x20] sm:$0xff]
    %v2170 = vld [vmem:[#allocation8 + $0x28] sm:$0xff]
    %v2171 = vld [vmem:[#allocation8 + $0x30] sm:$0xff]
    %v2172 = vld [vmem:[#allocation8 + $0x38] sm:$0xff]
    %v2173 = vld [vmem:[#allocation8 + $0x40] sm:$0xff]
    %v2174 = vld [vmem:[#allocation8 + $0x48] sm:$0xff]
    %v2175 = vld [vmem:[#allocation8 + $0x50] sm:$0xff]
    %v2176 = vld [vmem:[#allocation8 + $0x58] sm:$0xff]
    %v2177 = vld [vmem:[#allocation8 + $0x60] sm:$0xff]
    %v2178 = vld [vmem:[#allocation8 + $0x68] sm:$0xff]
    %v2179 = vld [vmem:[#allocation8 + $0x70] sm:$0xff]
    %v2180 = vld [vmem:[#allocation8 + $0x78] sm:$0xff]
    %v2181 = vld [vmem:[%s5] sm:$0x1]
    %v2183 = vperm.slane %v2181, 0
    %2185 = vmatpush.msra.mxu0 %v2180
    %2186 = vmatpush.msra.mxu0 %v2179
    %2187 = vmatpush.msra.mxu0 %v2178
    %2188 = vmatpush.msra.mxu0 %v2177
    %2189 = vmatpush.msra.mxu0 %v2176
    %2190 = vmatpush.msra.mxu0 %v2175
    %2191 = vmatpush.msra.mxu0 %v2174
    %2192 = vmatpush.msra.mxu0 %v2173
    %2193 = vmatpush.msra.mxu0 %v2172
    %2194 = vmatpush.msra.mxu0 %v2171
    %2195 = vmatpush.msra.mxu0 %v2170
    %2196 = vmatpush.msra.mxu0 %v2169
    %2197 = vmatpush.msra.mxu0 %v2168
    %2198 = vmatpush.msra.mxu0 %v2167
    %2199 = vmatpush.msra.mxu0 %v2166
    %2200 = vmatpush.msra.mxu0 %v2165
    %2201 = vmatmul.f32.gmra.mxu0 %v2157
    %v2202 = vpop.f32.mrf.mxu0
    %v2203 = vadd.f32 %v2183, %v2202
    %2204 = vmatmul.f32.gmra.mxu0 %v2158
    %v2205 = vpop.f32.mrf.mxu0
    %v2206 = vadd.f32 %v2183, %v2205
    %2207 = vmatmul.f32.gmra.mxu0 %v2159
    %v2208 = vpop.f32.mrf.mxu0
    %v2209 = vadd.f32 %v2183, %v2208
    %2210 = vmatmul.f32.gmra.mxu0 %v2160
    %v2211 = vpop.f32.mrf.mxu0
    %v2212 = vadd.f32 %v2183, %v2211
    %2213 = vmatmul.f32.gmra.mxu0 %v2161
    %v2214 = vpop.f32.mrf.mxu0
    %v2215 = vadd.f32 %v2183, %v2214
    %2216 = vmatmul.f32.gmra.mxu0 %v2162
    %v2217 = vpop.f32.mrf.mxu0
    %v2218 = vadd.f32 %v2183, %v2217
    %2219 = vmatmul.f32.gmra.mxu0 %v2163
    %v2220 = vpop.f32.mrf.mxu0
    %v2221 = vadd.f32 %v2183, %v2220
    %2222 = vmatmul.f32.gmra.mxu0 %v2164
    %v2223 = vpop.f32.mrf.mxu0
    %v2224 = vadd.f32 %v2183, %v2223
    %2225 = vdwg.mxu0
    %2226 = vst [vmem:[%s6] sm:$0xff] %v2203
    %2227 = vst [vmem:[%s6 + $0x8] sm:$0xff] %v2206
    %2228 = vst [vmem:[%s6 + $0x10] sm:$0xff] %v2209
    %2229 = vst [vmem:[%s6 + $0x18] sm:$0xff] %v2212
    %2230 = vst [vmem:[%s6 + $0x20] sm:$0xff] %v2215
    %2231 = vst [vmem:[%s6 + $0x28] sm:$0xff] %v2218
    %2232 = vst [vmem:[%s6 + $0x30] sm:$0xff] %v2221
    %2233 = vst [vmem:[%s6 + $0x38] sm:$0xff] %v2224
    // Predicated region
    $region38: #{chatbot_forward.1} parent=1 // pred_check
      _
    $region39: #{chatbot_forward.1} parent=1 // pred_check_branch
      %2235 = sbr.rel (0) target = $region41
    $region40: #{chatbot_forward.1} parent=1 // pred_region
      _
    $region41: #{chatbot_forward.1} parent=1 // pred_fallthru
      _
    // Predicated region
    $region42: #{chatbot_forward.1} parent=1 // pred_check
      _
    $region43: #{chatbot_forward.1} parent=1 // pred_check_branch
      %2237 = sbr.rel (0) target = $region45
    $region44: #{chatbot_forward.1} parent=1 // pred_region
      _
    $region45: #{chatbot_forward.1} parent=1 // pred_fallthru
      _
    %2238 = vsyncpa [#allocation5], 1
    %2239 = vsyncpa [#allocation7], 1

</llo_original>
